<compile_context>
chip_gen: v6e
topology: v6e:2x2x1
jax: 0.10.0
libtpu: 0.0.40
codegen_flags: <defaults>
</compile_context>

<pallas_src>
import jax
import jax.numpy as jnp
from jax import lax
from jax.experimental import pallas as pl
from jax.experimental.pallas import tpu as pltpu


# ----------------------------- fused Pallas kernel ------------------------- #

def make_fused_gcnn_kernel(n_layers, max_degree, conv_width):
    D, C = max_degree, conv_width

    def kernel(atoms_ref, adj_ref, bsum_ref, deg_ref, *rest):
        out_ref = rest[-1]
        prm = rest[:-1]   # [Wa, Wb, bias, bn_scale, bn_shift] * n_layers + [fc_w, fc_b]

        x = atoms_ref[0]                              # (A, Fa)  f32
        adj = adj_ref[0]                              # (A, A)   bf16 (self + neighbor counts)
        bsum = bsum_ref[0].astype(jnp.bfloat16)       # (A, Fb)
        deg = deg_ref[0]                              # (A, 1)   f32
        A = x.shape[0]

        # Degree one-hot built in-kernel (no (N, D) float mask DMA).
        iota = lax.broadcasted_iota(jnp.int32, (A, D), 1).astype(jnp.float32)
        onehot = (deg == iota).astype(jnp.float32)    # (A, D); deg == D matches nothing

        for li in range(n_layers):
            w_atom = prm[5 * li + 0][...]             # (Fin_a, D*C) bf16
            w_bond = prm[5 * li + 1][...]             # (Fb,    D*C) bf16
            bias = prm[5 * li + 2][...]               # (1,     D*C) f32
            scale = prm[5 * li + 3][...]              # (A, 1) f32  = gamma/sqrt(var+eps)
            shift = prm[5 * li + 4][...]              # (A, 1) f32  = beta - mean*scale

            # self + neighbor sum as one MXU matmul.
            nb = jnp.dot(adj, x.astype(jnp.bfloat16),
                         preferred_element_type=jnp.float32)           # (A, Fin_a)

            # merged per-degree linears -> one lane-dense (A, D*C = 128) slab.
            y = jnp.dot(nb.astype(jnp.bfloat16), w_atom,
                        preferred_element_type=jnp.float32)
            y = y + jnp.dot(bsum, w_bond, preferred_element_type=jnp.float32)
            y = y + bias                                                # (A, D*C)

            # degree select: out[a, :] = y[a, deg(a)*C : deg(a)*C + C]
            acc = jnp.zeros((A, C), jnp.float32)
            for d in range(D):                                          # static unroll
                acc = acc + onehot[:, d:d + 1] * y[:, d * C:(d + 1) * C]

            # BatchNorm1d(max_atoms) eval-mode affine (per atom index) + ReLU.
            x = jnp.maximum(acc * scale + shift, 0.0)                   # (A, C)
            # Dropout: identity in eval mode.

        fc_w = prm[5 * n_layers + 0][...]             # (C, O) bf16
        fc_b = prm[5 * n_layers + 1][...]             # (1, O) f32

        m = jnp.mean(x, axis=0, keepdims=True)        # (1, C)  sublane reduce
        out = jnp.dot(m.astype(jnp.bfloat16), fc_w,
                      preferred_element_type=jnp.float32) + fc_b
        out_ref[0] = jnp.clip(out, 0.0, 1.0)          # Hardtanh(0, 1)

    return kernel


# ----------------------------- pallas_call wrapper -------------------------- #

def _const_spec(arr):
    nd = arr.ndim
    return pl.BlockSpec(arr.shape, lambda b, _nd=nd: (0,) * _nd)


def _per_mol_spec(arr):
    nd = arr.ndim
    return pl.BlockSpec((1,) + tuple(arr.shape[1:]),
                        lambda b, _nd=nd: (b,) + (0,) * (_nd - 1))


def gcnn_forward(state, p, atoms, bonds, edges):
    B, A, _ = atoms.shape
    D, C, O = p['max_degree'], p['graph_conv_width'], p['output_dim']
    L = p['number_of_gcnn_layers']

    # Dense self+neighbor adjacency (neighbor multiplicity counts + identity);
    # small-integer counts are exact in bf16.
    valid = (edges >= 0)
    idx = jnp.where(valid, edges, 0)
    nb_adj = (jax.nn.one_hot(idx, A, dtype=jnp.float32)
              * valid[..., None].astype(jnp.float32)).sum(axis=2)       # (B, A, A)
    adj = (nb_adj + jnp.eye(A, dtype=jnp.float32)[None]).astype(jnp.bfloat16)
    bond_sum = bonds.sum(axis=2)                                        # (B, A, Fb)
    deg = valid.sum(-1).astype(jnp.float32)[..., None]                  # (B, A, 1)

    inputs = [atoms, adj, bond_sum, deg]
    in_specs = [_per_mol_spec(a) for a in inputs]
    for layer in state['layers']:
        for name in ('Wa', 'Wb', 'bias', 'bn_scale', 'bn_shift'):
            inputs.append(layer[name])
            in_specs.append(_const_spec(layer[name]))
    for arr in (state['fc_w'], state['fc_b']):
        inputs.append(arr)
        in_specs.append(_const_spec(arr))

    kernel = make_fused_gcnn_kernel(L, D, C)
    out = pl.pallas_call(
        kernel,
        grid=(B,),                                   # one molecule per grid step
        in_specs=in_specs,
        out_specs=pl.BlockSpec((1, 1, O), lambda b: (b, 0, 0)),
        out_shape=jax.ShapeDtypeStruct((B, 1, O), jnp.float32),
        compiler_params=pltpu.CompilerParams(
            # batch axis is fully independent -> shard across TensorCores (v7x).
            dimension_semantics=("parallel",)),
    )(*inputs)
    return out[:, 0, :]


# ------------------------------ params & reference -------------------------- #

def xavier_uniform(key, fan_in, fan_out):
    bound = jnp.sqrt(6.0 / (fan_in + fan_out))
    return jax.random.uniform(key, (fan_in, fan_out), jnp.float32,
                              minval=-bound, maxval=bound)


def init_gcnn_params(key, p):
    keys = iter(jax.random.split(key, 64))
    A, D, C = p['max_atoms'], p['max_degree'], p['graph_conv_width']
    Fb, eps = p['num_bond_features'], 1e-5
    layers = []
    for li in range(p['number_of_gcnn_layers']):
        fin_a = p['num_atom_features'] if li == 0 else C
        fin = fin_a + Fb
        W = jnp.stack([xavier_uniform(next(keys), fin, C) for _ in range(D)])  # (D, fin, C)
        # merged layout: Wm[f, d*C + c] = W[d, f, c]  -> one (fin, D*C) matmul
        Wm = jnp.transpose(W, (1, 0, 2)).reshape(fin, D * C)
        layers.append(dict(
            Wa=Wm[:fin_a, :].astype(jnp.bfloat16),           # atom-feature rows
            Wb=Wm[fin_a:, :].astype(jnp.bfloat16),           # bond-feature rows
            bias=jnp.zeros((1, D * C), jnp.float32),         # Linear bias init -> 0
            # BatchNorm1d(max_atoms) eval-mode params at fresh init
            bn_scale=(jnp.ones((A,)) / jnp.sqrt(jnp.ones((A,)) + eps)).reshape(A, 1),
            bn_shift=jnp.zeros((A, 1), jnp.float32)))
    fc_w = xavier_uniform(next(keys), C, p['output_dim']).astype(jnp.bfloat16)
    fc_b = jnp.zeros((1, p['output_dim']), jnp.float32)
    return dict(layers=layers, fc_w=fc_w, fc_b=fc_b)


def gcnn_forward_ref(state, p, atoms, bonds, edges):
    """Pure-JAX (non-Pallas) reference with torch-style gather neighbor lookup.

    Matmul operands are cast to bf16 with f32 accumulation, exactly like the
    kernel, so the comparison isolates the Pallas implementation."""
    B, A, _ = atoms.shape
    D, C = p['max_degree'], p['graph_conv_width']
    valid = edges >= 0
    idx = jnp.where(valid, edges, 0)
    deg = valid.sum(-1)                                                  # (B, A)
    bsum = bonds.sum(axis=2)                                             # (B, A, Fb)
    x = atoms
    for layer in state['layers']:
        xq = x.astype(jnp.bfloat16).astype(jnp.float32)
        gathered = jax.vmap(lambda xb, ib: xb[ib])(xq, idx)              # (B, A, D, F)
        gathered = gathered * valid[..., None].astype(jnp.float32)
        summed_atom = xq + gathered.sum(axis=2)                          # include_self
        y = jnp.einsum('baf,fk->bak', summed_atom.astype(jnp.bfloat16), layer['Wa'],
                       preferred_element_type=jnp.float32)
        y = y + jnp.einsum('baf,fk->bak', bsum.astype(jnp.bfloat16), layer['Wb'],
                           preferred_element_type=jnp.float32)
        y = y + layer['bias'][None]                                      # (B, A, D*C)
        acc = jnp.zeros((B, A, C), jnp.float32)
        for d in range(D):
            sel = (deg == d)[..., None].astype(jnp.float32)
            acc = acc + sel * y[..., d * C:(d + 1) * C]
        x = jnp.maximum(acc * layer['bn_scale'][None] + layer['bn_shift'][None], 0.0)
    m = jnp.mean(x, axis=1)                                              # (B, C)
    out = jnp.dot(m.astype(jnp.bfloat16), state['fc_w'],
                  preferred_element_type=jnp.float32) + state['fc_b']
    return jnp.clip(out, 0.0, 1.0)


# ---------------------------------- main ------------------------------------ #

if __name__ == "__main__":
    params = dict(num_atom_features=8, num_bond_features=4,
                  graph_conv_width=32, max_degree=4, max_atoms=16,
                  number_of_gcnn_layers=2, dropout_graph_encoder=0.1,
                  output_dim=8)
    B, A = 2, params['max_atoms']
    D, Fa, Fb = params['max_degree'], params['num_atom_features'], params['num_bond_features']

    key = jax.random.PRNGKey(0)
    k_atoms, k_bonds, k_edges, k_params = jax.random.split(key, 4)
    atoms = jax.random.normal(k_atoms, (B, A, Fa), jnp.float32)
    bonds = jax.random.normal(k_bonds, (B, A, D, Fb), jnp.float32)
    # edges in [-1, A-1]; -1 marks a missing neighbor slot
    edges = jax.random.randint(k_edges, (B, A, D), -1, A, dtype=jnp.int32)
    bonds = bonds * (edges >= 0)[..., None].astype(jnp.float32)

    state = init_gcnn_params(k_params, params)

    out = gcnn_forward(state, params, atoms, bonds, edges)
    out = jax.block_until_ready(out)

    ref = gcnn_forward_ref(state, params, atoms, bonds, edges)
    assert out.shape == (B, params['output_dim'])
    assert jnp.allclose(out, ref, atol=1e-2, rtol=1e-2), (
        "Pallas != JAX reference (max abs diff "
        f"{float(jnp.max(jnp.abs(out - ref)))})")

    print("KERNEL_OK")
</pallas_src>

<mosaic_0001>
module attributes {stable_mosaic.version = 11 : i64} {
  func.func @kernel(%arg0: i32, %arg1: memref<1x16x8xf32, #tpu.memory_space<vmem>>, %arg2: memref<1x16x16xbf16, #tpu.memory_space<vmem>>, %arg3: memref<1x16x4xf32, #tpu.memory_space<vmem>>, %arg4: memref<1x16x1xf32, #tpu.memory_space<vmem>>, %arg5: memref<8x128xbf16, #tpu.memory_space<vmem>>, %arg6: memref<4x128xbf16, #tpu.memory_space<vmem>>, %arg7: memref<1x128xf32, #tpu.memory_space<vmem>>, %arg8: memref<16x1xf32, #tpu.memory_space<vmem>>, %arg9: memref<16x1xf32, #tpu.memory_space<vmem>>, %arg10: memref<32x128xbf16, #tpu.memory_space<vmem>>, %arg11: memref<4x128xbf16, #tpu.memory_space<vmem>>, %arg12: memref<1x128xf32, #tpu.memory_space<vmem>>, %arg13: memref<16x1xf32, #tpu.memory_space<vmem>>, %arg14: memref<16x1xf32, #tpu.memory_space<vmem>>, %arg15: memref<32x8xbf16, #tpu.memory_space<vmem>>, %arg16: memref<1x8xf32, #tpu.memory_space<vmem>>, %arg17: memref<1x1x8xf32, #tpu.memory_space<vmem>>) attributes {dimension_semantics = [#tpu.dimension_semantics<parallel>], iteration_bounds = array<i64: 2>, scalar_prefetch = 0 : i64, scratch_operands = 0 : i64, tpu.core_type = #tpu.core_type<tc>, window_params = [{transform_indices = @transform_0, window_bounds = array<i64: 1, 16, 8>}, {transform_indices = @transform_1, window_bounds = array<i64: 1, 16, 16>}, {transform_indices = @transform_2, window_bounds = array<i64: 1, 16, 4>}, {transform_indices = @transform_3, window_bounds = array<i64: 1, 16, 1>}, {pipeline_mode = #tpu.pipeline_mode<synchronous>, transform_indices = @transform_4, window_bounds = array<i64: 8, 128>}, {pipeline_mode = #tpu.pipeline_mode<synchronous>, transform_indices = @transform_5, window_bounds = array<i64: 4, 128>}, {pipeline_mode = #tpu.pipeline_mode<synchronous>, transform_indices = @transform_6, window_bounds = array<i64: 1, 128>}, {pipeline_mode = #tpu.pipeline_mode<synchronous>, transform_indices = @transform_7, window_bounds = array<i64: 16, 1>}, {pipeline_mode = #tpu.pipeline_mode<synchronous>, transform_indices = @transform_8, window_bounds = array<i64: 16, 1>}, {pipeline_mode = #tpu.pipeline_mode<synchronous>, transform_indices = @transform_9, window_bounds = array<i64: 32, 128>}, {pipeline_mode = #tpu.pipeline_mode<synchronous>, transform_indices = @transform_10, window_bounds = array<i64: 4, 128>}, {pipeline_mode = #tpu.pipeline_mode<synchronous>, transform_indices = @transform_11, window_bounds = array<i64: 1, 128>}, {pipeline_mode = #tpu.pipeline_mode<synchronous>, transform_indices = @transform_12, window_bounds = array<i64: 16, 1>}, {pipeline_mode = #tpu.pipeline_mode<synchronous>, transform_indices = @transform_13, window_bounds = array<i64: 16, 1>}, {pipeline_mode = #tpu.pipeline_mode<synchronous>, transform_indices = @transform_14, window_bounds = array<i64: 32, 8>}, {pipeline_mode = #tpu.pipeline_mode<synchronous>, transform_indices = @transform_15, window_bounds = array<i64: 1, 8>}, {transform_indices = @transform_16, window_bounds = array<i64: 1, 1, 8>}]} {
    %c0 = arith.constant 0 : index
    %c0_0 = arith.constant 0 : index
    %c0_1 = arith.constant 0 : index
    %0 = vector.load %arg1[%c0, %c0_0, %c0_1] : memref<1x16x8xf32, #tpu.memory_space<vmem>>, vector<1x16x8xf32>
    %1 = vector.shape_cast %0 : vector<1x16x8xf32> to vector<16x8xf32>
    %c0_2 = arith.constant 0 : index
    %c0_3 = arith.constant 0 : index
    %c0_4 = arith.constant 0 : index
    %2 = vector.load %arg2[%c0_2, %c0_3, %c0_4] : memref<1x16x16xbf16, #tpu.memory_space<vmem>>, vector<1x16x16xbf16>
    %3 = vector.shape_cast %2 : vector<1x16x16xbf16> to vector<16x16xbf16>
    %c0_5 = arith.constant 0 : index
    %c0_6 = arith.constant 0 : index
    %c0_7 = arith.constant 0 : index
    %4 = vector.load %arg3[%c0_5, %c0_6, %c0_7] : memref<1x16x4xf32, #tpu.memory_space<vmem>>, vector<1x16x4xf32>
    %5 = vector.shape_cast %4 : vector<1x16x4xf32> to vector<16x4xf32>
    %6 = arith.truncf %5 : vector<16x4xf32> to vector<16x4xbf16>
    %c0_8 = arith.constant 0 : index
    %c0_9 = arith.constant 0 : index
    %c0_10 = arith.constant 0 : index
    %7 = vector.load %arg4[%c0_8, %c0_9, %c0_10] : memref<1x16x1xf32, #tpu.memory_space<vmem>>, vector<1x16x1xf32>
    %8 = vector.shape_cast %7 : vector<1x16x1xf32> to vector<16x1xf32>
    %9 = tpu.iota {dimensions = array<i32: 1>} : vector<16x4xi32>
    %10 = arith.sitofp %9 : vector<16x4xi32> to vector<16x4xf32>
    %11 = vector.broadcast %8 : vector<16x1xf32> to vector<16x4xf32>
    %12 = arith.cmpf oeq, %11, %10 : vector<16x4xf32>
    %13 = arith.extui %12 : vector<16x4xi1> to vector<16x4xi32>
    %14 = arith.sitofp %13 : vector<16x4xi32> to vector<16x4xf32>
    %c0_11 = arith.constant 0 : index
    %c0_12 = arith.constant 0 : index
    %15 = vector.load %arg5[%c0_11, %c0_12] : memref<8x128xbf16, #tpu.memory_space<vmem>>, vector<8x128xbf16>
    %c0_13 = arith.constant 0 : index
    %c0_14 = arith.constant 0 : index
    %16 = vector.load %arg6[%c0_13, %c0_14] : memref<4x128xbf16, #tpu.memory_space<vmem>>, vector<4x128xbf16>
    %c0_15 = arith.constant 0 : index
    %c0_16 = arith.constant 0 : index
    %17 = vector.load %arg7[%c0_15, %c0_16] : memref<1x128xf32, #tpu.memory_space<vmem>>, vector<1x128xf32>
    %c0_17 = arith.constant 0 : index
    %c0_18 = arith.constant 0 : index
    %18 = vector.load %arg8[%c0_17, %c0_18] : memref<16x1xf32, #tpu.memory_space<vmem>>, vector<16x1xf32>
    %c0_19 = arith.constant 0 : index
    %c0_20 = arith.constant 0 : index
    %19 = vector.load %arg9[%c0_19, %c0_20] : memref<16x1xf32, #tpu.memory_space<vmem>>, vector<16x1xf32>
    %20 = arith.truncf %1 : vector<16x8xf32> to vector<16x8xbf16>
    %cst = arith.constant dense<0.000000e+00> : vector<16x8xf32>
    %21 = tpu.matmul %3, %20, %cst {dimension_numbers = #tpu.dot_dimension_numbers<[1], [0], [0], [1], [0, 0, 1, 1], [], []>} : vector<16x16xbf16>, vector<16x8xbf16>, vector<16x8xf32> -> vector<16x8xf32>
    %22 = arith.truncf %21 : vector<16x8xf32> to vector<16x8xbf16>
    %cst_21 = arith.constant dense<0.000000e+00> : vector<16x128xf32>
    %23 = tpu.matmul %22, %15, %cst_21 {dimension_numbers = #tpu.dot_dimension_numbers<[1], [0], [0], [1], [0, 0, 1, 1], [], []>} : vector<16x8xbf16>, vector<8x128xbf16>, vector<16x128xf32> -> vector<16x128xf32>
    %cst_22 = arith.constant dense<0.000000e+00> : vector<16x128xf32>
    %24 = tpu.matmul %6, %16, %cst_22 {dimension_numbers = #tpu.dot_dimension_numbers<[1], [0], [0], [1], [0, 0, 1, 1], [], []>} : vector<16x4xbf16>, vector<4x128xbf16>, vector<16x128xf32> -> vector<16x128xf32>
    %25 = arith.addf %23, %24 : vector<16x128xf32>
    %26 = vector.broadcast %17 : vector<1x128xf32> to vector<16x128xf32>
    %27 = arith.addf %25, %26 : vector<16x128xf32>
    %cst_23 = arith.constant 0.000000e+00 : f32
    %28 = vector.broadcast %cst_23 : f32 to vector<16x32xf32>
    %29 = vector.extract_strided_slice %14 {offsets = [0, 0], sizes = [16, 1], strides = [1, 1]} : vector<16x4xf32> to vector<16x1xf32>
    %30 = vector.extract_strided_slice %27 {offsets = [0, 0], sizes = [16, 32], strides = [1, 1]} : vector<16x128xf32> to vector<16x32xf32>
    %31 = vector.broadcast %29 : vector<16x1xf32> to vector<16x32xf32>
    %32 = arith.mulf %31, %30 : vector<16x32xf32>
    %33 = arith.addf %28, %32 : vector<16x32xf32>
    %34 = vector.extract_strided_slice %14 {offsets = [0, 1], sizes = [16, 1], strides = [1, 1]} : vector<16x4xf32> to vector<16x1xf32>
    %35 = vector.extract_strided_slice %27 {offsets = [0, 32], sizes = [16, 32], strides = [1, 1]} : vector<16x128xf32> to vector<16x32xf32>
    %36 = vector.broadcast %34 : vector<16x1xf32> to vector<16x32xf32>
    %37 = arith.mulf %36, %35 : vector<16x32xf32>
    %38 = arith.addf %33, %37 : vector<16x32xf32>
    %39 = vector.extract_strided_slice %14 {offsets = [0, 2], sizes = [16, 1], strides = [1, 1]} : vector<16x4xf32> to vector<16x1xf32>
    %40 = vector.extract_strided_slice %27 {offsets = [0, 64], sizes = [16, 32], strides = [1, 1]} : vector<16x128xf32> to vector<16x32xf32>
    %41 = vector.broadcast %39 : vector<16x1xf32> to vector<16x32xf32>
    %42 = arith.mulf %41, %40 : vector<16x32xf32>
    %43 = arith.addf %38, %42 : vector<16x32xf32>
    %44 = vector.extract_strided_slice %14 {offsets = [0, 3], sizes = [16, 1], strides = [1, 1]} : vector<16x4xf32> to vector<16x1xf32>
    %45 = vector.extract_strided_slice %27 {offsets = [0, 96], sizes = [16, 32], strides = [1, 1]} : vector<16x128xf32> to vector<16x32xf32>
    %46 = vector.broadcast %44 : vector<16x1xf32> to vector<16x32xf32>
    %47 = arith.mulf %46, %45 : vector<16x32xf32>
    %48 = arith.addf %43, %47 : vector<16x32xf32>
    %49 = vector.broadcast %18 : vector<16x1xf32> to vector<16x32xf32>
    %50 = arith.mulf %48, %49 : vector<16x32xf32>
    %51 = vector.broadcast %19 : vector<16x1xf32> to vector<16x32xf32>
    %52 = arith.addf %50, %51 : vector<16x32xf32>
    %cst_24 = arith.constant 0.000000e+00 : f32
    %53 = vector.broadcast %cst_24 : f32 to vector<16x32xf32>
    %54 = arith.maximumf %52, %53 : vector<16x32xf32>
    %c0_25 = arith.constant 0 : index
    %c0_26 = arith.constant 0 : index
    %55 = vector.load %arg10[%c0_25, %c0_26] : memref<32x128xbf16, #tpu.memory_space<vmem>>, vector<32x128xbf16>
    %c0_27 = arith.constant 0 : index
    %c0_28 = arith.constant 0 : index
    %56 = vector.load %arg11[%c0_27, %c0_28] : memref<4x128xbf16, #tpu.memory_space<vmem>>, vector<4x128xbf16>
    %c0_29 = arith.constant 0 : index
    %c0_30 = arith.constant 0 : index
    %57 = vector.load %arg12[%c0_29, %c0_30] : memref<1x128xf32, #tpu.memory_space<vmem>>, vector<1x128xf32>
    %c0_31 = arith.constant 0 : index
    %c0_32 = arith.constant 0 : index
    %58 = vector.load %arg13[%c0_31, %c0_32] : memref<16x1xf32, #tpu.memory_space<vmem>>, vector<16x1xf32>
    %c0_33 = arith.constant 0 : index
    %c0_34 = arith.constant 0 : index
    %59 = vector.load %arg14[%c0_33, %c0_34] : memref<16x1xf32, #tpu.memory_space<vmem>>, vector<16x1xf32>
    %60 = arith.truncf %54 : vector<16x32xf32> to vector<16x32xbf16>
    %cst_35 = arith.constant dense<0.000000e+00> : vector<16x32xf32>
    %61 = tpu.matmul %3, %60, %cst_35 {dimension_numbers = #tpu.dot_dimension_numbers<[1], [0], [0], [1], [0, 0, 1, 1], [], []>} : vector<16x16xbf16>, vector<16x32xbf16>, vector<16x32xf32> -> vector<16x32xf32>
    %62 = arith.truncf %61 : vector<16x32xf32> to vector<16x32xbf16>
    %cst_36 = arith.constant dense<0.000000e+00> : vector<16x128xf32>
    %63 = tpu.matmul %62, %55, %cst_36 {dimension_numbers = #tpu.dot_dimension_numbers<[1], [0], [0], [1], [0, 0, 1, 1], [], []>} : vector<16x32xbf16>, vector<32x128xbf16>, vector<16x128xf32> -> vector<16x128xf32>
    %cst_37 = arith.constant dense<0.000000e+00> : vector<16x128xf32>
    %64 = tpu.matmul %6, %56, %cst_37 {dimension_numbers = #tpu.dot_dimension_numbers<[1], [0], [0], [1], [0, 0, 1, 1], [], []>} : vector<16x4xbf16>, vector<4x128xbf16>, vector<16x128xf32> -> vector<16x128xf32>
    %65 = arith.addf %63, %64 : vector<16x128xf32>
    %66 = vector.broadcast %57 : vector<1x128xf32> to vector<16x128xf32>
    %67 = arith.addf %65, %66 : vector<16x128xf32>
    %cst_38 = arith.constant 0.000000e+00 : f32
    %68 = vector.broadcast %cst_38 : f32 to vector<16x32xf32>
    %69 = vector.extract_strided_slice %14 {offsets = [0, 0], sizes = [16, 1], strides = [1, 1]} : vector<16x4xf32> to vector<16x1xf32>
    %70 = vector.extract_strided_slice %67 {offsets = [0, 0], sizes = [16, 32], strides = [1, 1]} : vector<16x128xf32> to vector<16x32xf32>
    %71 = vector.broadcast %69 : vector<16x1xf32> to vector<16x32xf32>
    %72 = arith.mulf %71, %70 : vector<16x32xf32>
    %73 = arith.addf %68, %72 : vector<16x32xf32>
    %74 = vector.extract_strided_slice %14 {offsets = [0, 1], sizes = [16, 1], strides = [1, 1]} : vector<16x4xf32> to vector<16x1xf32>
    %75 = vector.extract_strided_slice %67 {offsets = [0, 32], sizes = [16, 32], strides = [1, 1]} : vector<16x128xf32> to vector<16x32xf32>
    %76 = vector.broadcast %74 : vector<16x1xf32> to vector<16x32xf32>
    %77 = arith.mulf %76, %75 : vector<16x32xf32>
    %78 = arith.addf %73, %77 : vector<16x32xf32>
    %79 = vector.extract_strided_slice %14 {offsets = [0, 2], sizes = [16, 1], strides = [1, 1]} : vector<16x4xf32> to vector<16x1xf32>
    %80 = vector.extract_strided_slice %67 {offsets = [0, 64], sizes = [16, 32], strides = [1, 1]} : vector<16x128xf32> to vector<16x32xf32>
    %81 = vector.broadcast %79 : vector<16x1xf32> to vector<16x32xf32>
    %82 = arith.mulf %81, %80 : vector<16x32xf32>
    %83 = arith.addf %78, %82 : vector<16x32xf32>
    %84 = vector.extract_strided_slice %14 {offsets = [0, 3], sizes = [16, 1], strides = [1, 1]} : vector<16x4xf32> to vector<16x1xf32>
    %85 = vector.extract_strided_slice %67 {offsets = [0, 96], sizes = [16, 32], strides = [1, 1]} : vector<16x128xf32> to vector<16x32xf32>
    %86 = vector.broadcast %84 : vector<16x1xf32> to vector<16x32xf32>
    %87 = arith.mulf %86, %85 : vector<16x32xf32>
    %88 = arith.addf %83, %87 : vector<16x32xf32>
    %89 = vector.broadcast %58 : vector<16x1xf32> to vector<16x32xf32>
    %90 = arith.mulf %88, %89 : vector<16x32xf32>
    %91 = vector.broadcast %59 : vector<16x1xf32> to vector<16x32xf32>
    %92 = arith.addf %90, %91 : vector<16x32xf32>
    %cst_39 = arith.constant 0.000000e+00 : f32
    %93 = vector.broadcast %cst_39 : f32 to vector<16x32xf32>
    %94 = arith.maximumf %92, %93 : vector<16x32xf32>
    %c0_40 = arith.constant 0 : index
    %c0_41 = arith.constant 0 : index
    %95 = vector.load %arg15[%c0_40, %c0_41] : memref<32x8xbf16, #tpu.memory_space<vmem>>, vector<32x8xbf16>
    %c0_42 = arith.constant 0 : index
    %c0_43 = arith.constant 0 : index
    %96 = vector.load %arg16[%c0_42, %c0_43] : memref<1x8xf32, #tpu.memory_space<vmem>>, vector<1x8xf32>
    %cst_44 = arith.constant dense<0.000000e+00> : vector<32xf32>
    %97 = vector.multi_reduction <add>, %94, %cst_44 [0] : vector<16x32xf32> to vector<32xf32>
    %98 = vector.shape_cast %97 : vector<32xf32> to vector<1x32xf32>
    %cst_45 = arith.constant 1.600000e+01 : f32
    %99 = vector.broadcast %cst_45 : f32 to vector<1x32xf32>
    %100 = arith.divf %98, %99 : vector<1x32xf32>
    %101 = arith.truncf %100 : vector<1x32xf32> to vector<1x32xbf16>
    %cst_46 = arith.constant dense<0.000000e+00> : vector<1x8xf32>
    %102 = tpu.matmul %101, %95, %cst_46 {dimension_numbers = #tpu.dot_dimension_numbers<[1], [0], [0], [1], [0, 0, 1, 1], [], []>} : vector<1x32xbf16>, vector<32x8xbf16>, vector<1x8xf32> -> vector<1x8xf32>
    %103 = arith.addf %102, %96 : vector<1x8xf32>
    %cst_47 = arith.constant 0.000000e+00 : f32
    %cst_48 = arith.constant 1.000000e+00 : f32
    %104 = vector.broadcast %cst_47 : f32 to vector<1x8xf32>
    %105 = arith.maximumf %104, %103 : vector<1x8xf32>
    %106 = vector.broadcast %cst_48 : f32 to vector<1x8xf32>
    %107 = arith.minimumf %106, %105 : vector<1x8xf32>
    %c0_49 = arith.constant 0 : index
    %c0_50 = arith.constant 0 : index
    %c0_51 = arith.constant 0 : index
    %108 = vector.load %arg17[%c0_49, %c0_50, %c0_51] : memref<1x1x8xf32, #tpu.memory_space<vmem>>, vector<1x1x8xf32>
    %109 = vector.shape_cast %108 : vector<1x1x8xf32> to vector<1x8xf32>
    %110 = vector.shape_cast %107 : vector<1x8xf32> to vector<1x1x8xf32>
    tpu.vector_store %arg17[%c0_49, %c0_50, %c0_51], %110 {strides = array<i32>} : memref<1x1x8xf32, #tpu.memory_space<vmem>>, vector<1x1x8xf32>,
    return
  }
  func.func @transform_0(%arg0: i32) -> (i32, i32, i32) {
    %c0_i32 = arith.constant 0 : i32
    %c0_i32_0 = arith.constant 0 : i32
    %c0_i32_1 = arith.constant 0 : i32
    return %arg0, %c0_i32, %c0_i32_0 : i32, i32, i32
  }
  func.func @transform_1(%arg0: i32) -> (i32, i32, i32) {
    %c0_i32 = arith.constant 0 : i32
    %c0_i32_0 = arith.constant 0 : i32
    %c0_i32_1 = arith.constant 0 : i32
    return %arg0, %c0_i32, %c0_i32_0 : i32, i32, i32
  }
  func.func @transform_2(%arg0: i32) -> (i32, i32, i32) {
    %c0_i32 = arith.constant 0 : i32
    %c0_i32_0 = arith.constant 0 : i32
    %c0_i32_1 = arith.constant 0 : i32
    return %arg0, %c0_i32, %c0_i32_0 : i32, i32, i32
  }
  func.func @transform_3(%arg0: i32) -> (i32, i32, i32) {
    %c0_i32 = arith.constant 0 : i32
    %c0_i32_0 = arith.constant 0 : i32
    %c0_i32_1 = arith.constant 0 : i32
    return %arg0, %c0_i32, %c0_i32_0 : i32, i32, i32
  }
  func.func @transform_4(%arg0: i32) -> (i32, i32) {
    %c0_i32 = arith.constant 0 : i32
    %c0_i32_0 = arith.constant 0 : i32
    %c0_i32_1 = arith.constant 0 : i32
    return %c0_i32, %c0_i32_0 : i32, i32
  }
  func.func @transform_5(%arg0: i32) -> (i32, i32) {
    %c0_i32 = arith.constant 0 : i32
    %c0_i32_0 = arith.constant 0 : i32
    %c0_i32_1 = arith.constant 0 : i32
    return %c0_i32, %c0_i32_0 : i32, i32
  }
  func.func @transform_6(%arg0: i32) -> (i32, i32) {
    %c0_i32 = arith.constant 0 : i32
    %c0_i32_0 = arith.constant 0 : i32
    %c0_i32_1 = arith.constant 0 : i32
    return %c0_i32, %c0_i32_0 : i32, i32
  }
  func.func @transform_7(%arg0: i32) -> (i32, i32) {
    %c0_i32 = arith.constant 0 : i32
    %c0_i32_0 = arith.constant 0 : i32
    %c0_i32_1 = arith.constant 0 : i32
    return %c0_i32, %c0_i32_0 : i32, i32
  }
  func.func @transform_8(%arg0: i32) -> (i32, i32) {
    %c0_i32 = arith.constant 0 : i32
    %c0_i32_0 = arith.constant 0 : i32
    %c0_i32_1 = arith.constant 0 : i32
    return %c0_i32, %c0_i32_0 : i32, i32
  }
  func.func @transform_9(%arg0: i32) -> (i32, i32) {
    %c0_i32 = arith.constant 0 : i32
    %c0_i32_0 = arith.constant 0 : i32
    %c0_i32_1 = arith.constant 0 : i32
    return %c0_i32, %c0_i32_0 : i32, i32
  }
  func.func @transform_10(%arg0: i32) -> (i32, i32) {
    %c0_i32 = arith.constant 0 : i32
    %c0_i32_0 = arith.constant 0 : i32
    %c0_i32_1 = arith.constant 0 : i32
    return %c0_i32, %c0_i32_0 : i32, i32
  }
  func.func @transform_11(%arg0: i32) -> (i32, i32) {
    %c0_i32 = arith.constant 0 : i32
    %c0_i32_0 = arith.constant 0 : i32
    %c0_i32_1 = arith.constant 0 : i32
    return %c0_i32, %c0_i32_0 : i32, i32
  }
  func.func @transform_12(%arg0: i32) -> (i32, i32) {
    %c0_i32 = arith.constant 0 : i32
    %c0_i32_0 = arith.constant 0 : i32
    %c0_i32_1 = arith.constant 0 : i32
    return %c0_i32, %c0_i32_0 : i32, i32
  }
  func.func @transform_13(%arg0: i32) -> (i32, i32) {
    %c0_i32 = arith.constant 0 : i32
    %c0_i32_0 = arith.constant 0 : i32
    %c0_i32_1 = arith.constant 0 : i32
    return %c0_i32, %c0_i32_0 : i32, i32
  }
  func.func @transform_14(%arg0: i32) -> (i32, i32) {
    %c0_i32 = arith.constant 0 : i32
    %c0_i32_0 = arith.constant 0 : i32
    %c0_i32_1 = arith.constant 0 : i32
    return %c0_i32, %c0_i32_0 : i32, i32
  }
  func.func @transform_15(%arg0: i32) -> (i32, i32) {
    %c0_i32 = arith.constant 0 : i32
    %c0_i32_0 = arith.constant 0 : i32
    %c0_i32_1 = arith.constant 0 : i32
    return %c0_i32, %c0_i32_0 : i32, i32
  }
  func.func @transform_16(%arg0: i32) -> (i32, i32, i32) {
    %c0_i32 = arith.constant 0 : i32
    %c0_i32_0 = arith.constant 0 : i32
    %c0_i32_1 = arith.constant 0 : i32
    return %arg0, %c0_i32, %c0_i32_0 : i32, i32, i32
  }
}

</mosaic_0001>

<llo_original>
// kernel: tpu_custom_call.1
$region0: #{tpu_custom_call.1}
  #allocation0 [shape = 'u32[]', space=smem, size = 0x4, offset = 0x4, fixed_abs, tag = 'smem constant byte address 0x4 - core index']
  #allocation1 [shape = 'u32[144,128]{1,0:T(1,128)}', space=vmem, size = 0x12000, scoped, tag = 'internal scratch']
  %s0 = inlined_call_operand.vmem [shape: f32[2,16,8], index: 0, kind: input, shape index: {}]
  %s1 = inlined_call_operand.vmem [shape: bf16[2,16,16], index: 1, kind: input, shape index: {}]
  %s2 = inlined_call_operand.vmem [shape: f32[2,16,4], index: 2, kind: input, shape index: {}]
  %s3 = inlined_call_operand.vmem [shape: f32[2,16,1], index: 3, kind: input, shape index: {}]
  %s4 = inlined_call_operand.vmem [shape: bf16[8,128], index: 4, kind: input, shape index: {}]
  %s5 = inlined_call_operand.vmem [shape: bf16[4,128], index: 5, kind: input, shape index: {}]
  %s6 = inlined_call_operand.vmem [shape: f32[1,128], index: 6, kind: input, shape index: {}]
  %s7 = inlined_call_operand.vmem [shape: f32[16,1], index: 7, kind: input, shape index: {}]
  %s8 = inlined_call_operand.vmem [shape: f32[16,1], index: 8, kind: input, shape index: {}]
  %s9 = inlined_call_operand.vmem [shape: bf16[32,128], index: 9, kind: input, shape index: {}]
  %s10 = inlined_call_operand.vmem [shape: bf16[4,128], index: 10, kind: input, shape index: {}]
  %s11 = inlined_call_operand.vmem [shape: f32[1,128], index: 11, kind: input, shape index: {}]
  %s12 = inlined_call_operand.vmem [shape: f32[16,1], index: 12, kind: input, shape index: {}]
  %s13 = inlined_call_operand.vmem [shape: f32[16,1], index: 13, kind: input, shape index: {}]
  %s14 = inlined_call_operand.vmem [shape: bf16[32,8], index: 14, kind: input, shape index: {}]
  %s15 = inlined_call_operand.vmem [shape: f32[1,8], index: 15, kind: input, shape index: {}]
  %s16 = inlined_call_operand.hbm [shape: f32[2,1,8], index: 16, kind: output, shape index: {}]
  %s17 = sld [smem:[#allocation0]]
  $region97: #{tpu_custom_call.1} parent=0
    _
  %s19 = ssub.s32 1, %s17
  %s20 = scalar_select 0, %s19, %s17
  $region1: #{tpu_custom_call.1} parent=0
    #allocation2 [shape = 'u8[1024]{0}', space=vmem, size = 0x400, scoped, tag = 'output window, operand 0']
    #allocation3 [shape = 's32[2]{0}', space=sflag, size = 0x8, scoped, tag = 'scoped memory for tpu_custom_call.1']
    %21 = vsyncpa [#allocation3], 0
    %s22 = scalar_lea.sflag [#allocation3], 1
    %23 = vsyncpa %s22, 0
    loop: start=0, step=1, limit=4
    $region2: #{tpu_custom_call.1} parent=1 // loop_pre_header
      _
    $region3: #{tpu_custom_call.1} parent=1 // loop_header
      %s25 = sphi 0, %s29
      %p26 = scmp.ge.s32.totalorder %s25, 4
      %s35 = sphi 0, %s37
      %s38 = sphi 0, %s35
      %s39 = sphi 0, %s38
      %s55 = sphi 0, %s39
      %s61 = sphi 0, %s63
      %s64 = sphi 0, %s61
      %s65 = sphi 0, %s64
      %s81 = sphi 0, %s65
      %s87 = sphi 0, %s89
      %s90 = sphi 0, %s87
      %s91 = sphi 0, %s90
      %s107 = sphi 0, %s91
      %s113 = sphi 0, %s115
      %s116 = sphi 0, %s113
      %s117 = sphi 0, %s116
      %s133 = sphi 0, %s117
      %s137 = sphi 0, %s137
      %s139 = sphi 0, %s137
      %s140 = sphi 0, %s139
      %s154 = sphi 0, %s140
      %s158 = sphi 0, %s158
      %s160 = sphi 0, %s158
      %s161 = sphi 0, %s160
      %s175 = sphi 0, %s161
      %s179 = sphi 0, %s179
      %s181 = sphi 0, %s179
      %s182 = sphi 0, %s181
      %s196 = sphi 0, %s182
      %s200 = sphi 0, %s200
      %s202 = sphi 0, %s200
      %s203 = sphi 0, %s202
      %s217 = sphi 0, %s203
      %s221 = sphi 0, %s221
      %s223 = sphi 0, %s221
      %s224 = sphi 0, %s223
      %s238 = sphi 0, %s224
      %s242 = sphi 0, %s242
      %s244 = sphi 0, %s242
      %s245 = sphi 0, %s244
      %s259 = sphi 0, %s245
      %s263 = sphi 0, %s263
      %s265 = sphi 0, %s263
      %s266 = sphi 0, %s265
      %s280 = sphi 0, %s266
      %s284 = sphi 0, %s284
      %s286 = sphi 0, %s284
      %s287 = sphi 0, %s286
      %s301 = sphi 0, %s287
      %s305 = sphi 0, %s305
      %s307 = sphi 0, %s305
      %s308 = sphi 0, %s307
      %s322 = sphi 0, %s308
      %s326 = sphi 0, %s326
      %s328 = sphi 0, %s326
      %s329 = sphi 0, %s328
      %s343 = sphi 0, %s329
      %s347 = sphi 0, %s347
      %s349 = sphi 0, %s347
      %s350 = sphi 0, %s349
      %s364 = sphi 0, %s350
      %s368 = sphi 0, %s368
      %s370 = sphi 0, %s368
      %s371 = sphi 0, %s370
      %s385 = sphi 0, %s371
      %s391 = sphi 0, %s393
      %s394 = sphi 0, %s391
      %s395 = sphi 0, %s394
      %s411 = sphi 0, %s395
    $region4: #{tpu_custom_call.1} parent=1 // loop_header_branch
      %28 = sbr.rel (%p26) target = $region8
    $region5: #{tpu_custom_call.1} parent=1 // loop_body
      %s30 = ssub.s32 %s25, 1
      %s31 = ssub.s32 %s25, 2
      %s32 = sadd.s32 %s25, 1
      %s33 = ssub.s32 %s25, %s32
      %p34 = scmp.eq.s32.totalorder %s33, 0
      %s36 = sadd.s32 %s35, 1
      %s37 = scalar_select %p34, %s35, %s36
      %p40 = pneg %p34
      %p41 = scmp.eq.s32.totalorder %s25, 1
      %p42 = por %p40, %p41
      %p43 = scmp.ne.s32.totalorder %s35, %s38
      %p44 = scmp.eq.s32.totalorder %s25, 0
      %p45 = por %p43, %p44
      %p46 = scmp.ne.s32.totalorder %s35, %s38
      %p47 = scmp.eq.s32.totalorder %s30, 1
      %p48 = por %p46, %p47
      %p49 = scmp.ne.s32.totalorder %s38, %s39
      %p50 = scmp.eq.s32.totalorder %s30, 0
      %p51 = por %p49, %p50
      %p52 = scmp.ne.s32.totalorder %s38, %s39
      %p53 = scmp.eq.s32.totalorder %s31, 1
      %p54 = por %p52, %p53
      %p56 = scmp.ne.s32.totalorder %s39, %s55
      %p57 = scmp.eq.s32.totalorder %s31, 0
      %p58 = por %p56, %p57
      %s59 = ssub.s32 %s25, %s32
      %p60 = scmp.eq.s32.totalorder %s59, 0
      %s62 = sadd.s32 %s61, 1
      %s63 = scalar_select %p60, %s61, %s62
      %p66 = pneg %p60
      %p67 = scmp.eq.s32.totalorder %s25, 1
      %p68 = por %p66, %p67
      %p69 = scmp.ne.s32.totalorder %s61, %s64
      %p70 = scmp.eq.s32.totalorder %s25, 0
      %p71 = por %p69, %p70
      %p72 = scmp.ne.s32.totalorder %s61, %s64
      %p73 = scmp.eq.s32.totalorder %s30, 1
      %p74 = por %p72, %p73
      %p75 = scmp.ne.s32.totalorder %s64, %s65
      %p76 = scmp.eq.s32.totalorder %s30, 0
      %p77 = por %p75, %p76
      %p78 = scmp.ne.s32.totalorder %s64, %s65
      %p79 = scmp.eq.s32.totalorder %s31, 1
      %p80 = por %p78, %p79
      %p82 = scmp.ne.s32.totalorder %s65, %s81
      %p83 = scmp.eq.s32.totalorder %s31, 0
      %p84 = por %p82, %p83
      %s85 = ssub.s32 %s25, %s32
      %p86 = scmp.eq.s32.totalorder %s85, 0
      %s88 = sadd.s32 %s87, 1
      %s89 = scalar_select %p86, %s87, %s88
      %p92 = pneg %p86
      %p93 = scmp.eq.s32.totalorder %s25, 1
      %p94 = por %p92, %p93
      %p95 = scmp.ne.s32.totalorder %s87, %s90
      %p96 = scmp.eq.s32.totalorder %s25, 0
      %p97 = por %p95, %p96
      %p98 = scmp.ne.s32.totalorder %s87, %s90
      %p99 = scmp.eq.s32.totalorder %s30, 1
      %p100 = por %p98, %p99
      %p101 = scmp.ne.s32.totalorder %s90, %s91
      %p102 = scmp.eq.s32.totalorder %s30, 0
      %p103 = por %p101, %p102
      %p104 = scmp.ne.s32.totalorder %s90, %s91
      %p105 = scmp.eq.s32.totalorder %s31, 1
      %p106 = por %p104, %p105
      %p108 = scmp.ne.s32.totalorder %s91, %s107
      %p109 = scmp.eq.s32.totalorder %s31, 0
      %p110 = por %p108, %p109
      %s111 = ssub.s32 %s25, %s32
      %p112 = scmp.eq.s32.totalorder %s111, 0
      %s114 = sadd.s32 %s113, 1
      %s115 = scalar_select %p112, %s113, %s114
      %p118 = pneg %p112
      %p119 = scmp.eq.s32.totalorder %s25, 1
      %p120 = por %p118, %p119
      %p121 = scmp.ne.s32.totalorder %s113, %s116
      %p122 = scmp.eq.s32.totalorder %s25, 0
      %p123 = por %p121, %p122
      %p124 = scmp.ne.s32.totalorder %s113, %s116
      %p125 = scmp.eq.s32.totalorder %s30, 1
      %p126 = por %p124, %p125
      %p127 = scmp.ne.s32.totalorder %s116, %s117
      %p128 = scmp.eq.s32.totalorder %s30, 0
      %p129 = por %p127, %p128
      %p130 = scmp.ne.s32.totalorder %s116, %s117
      %p131 = scmp.eq.s32.totalorder %s31, 1
      %p132 = por %p130, %p131
      %p134 = scmp.ne.s32.totalorder %s117, %s133
      %p135 = scmp.eq.s32.totalorder %s31, 0
      %p136 = por %p134, %p135
      %s138 = sadd.s32 %s137, 1
      %p141 = scmp.eq.s32.totalorder %s25, 1
      %p142 = scmp.ne.s32.totalorder %s137, %s139
      %p143 = scmp.eq.s32.totalorder %s25, 0
      %p144 = por %p142, %p143
      %p145 = scmp.ne.s32.totalorder %s137, %s139
      %p146 = scmp.eq.s32.totalorder %s30, 1
      %p147 = por %p145, %p146
      %p148 = scmp.ne.s32.totalorder %s139, %s140
      %p149 = scmp.eq.s32.totalorder %s30, 0
      %p150 = por %p148, %p149
      %p151 = scmp.ne.s32.totalorder %s139, %s140
      %p152 = scmp.eq.s32.totalorder %s31, 1
      %p153 = por %p151, %p152
      %p155 = scmp.ne.s32.totalorder %s140, %s154
      %p156 = scmp.eq.s32.totalorder %s31, 0
      %p157 = por %p155, %p156
      %s159 = sadd.s32 %s158, 1
      %p162 = scmp.eq.s32.totalorder %s25, 1
      %p163 = scmp.ne.s32.totalorder %s158, %s160
      %p164 = scmp.eq.s32.totalorder %s25, 0
      %p165 = por %p163, %p164
      %p166 = scmp.ne.s32.totalorder %s158, %s160
      %p167 = scmp.eq.s32.totalorder %s30, 1
      %p168 = por %p166, %p167
      %p169 = scmp.ne.s32.totalorder %s160, %s161
      %p170 = scmp.eq.s32.totalorder %s30, 0
      %p171 = por %p169, %p170
      %p172 = scmp.ne.s32.totalorder %s160, %s161
      %p173 = scmp.eq.s32.totalorder %s31, 1
      %p174 = por %p172, %p173
      %p176 = scmp.ne.s32.totalorder %s161, %s175
      %p177 = scmp.eq.s32.totalorder %s31, 0
      %p178 = por %p176, %p177
      %s180 = sadd.s32 %s179, 1
      %p183 = scmp.eq.s32.totalorder %s25, 1
      %p184 = scmp.ne.s32.totalorder %s179, %s181
      %p185 = scmp.eq.s32.totalorder %s25, 0
      %p186 = por %p184, %p185
      %p187 = scmp.ne.s32.totalorder %s179, %s181
      %p188 = scmp.eq.s32.totalorder %s30, 1
      %p189 = por %p187, %p188
      %p190 = scmp.ne.s32.totalorder %s181, %s182
      %p191 = scmp.eq.s32.totalorder %s30, 0
      %p192 = por %p190, %p191
      %p193 = scmp.ne.s32.totalorder %s181, %s182
      %p194 = scmp.eq.s32.totalorder %s31, 1
      %p195 = por %p193, %p194
      %p197 = scmp.ne.s32.totalorder %s182, %s196
      %p198 = scmp.eq.s32.totalorder %s31, 0
      %p199 = por %p197, %p198
      %s201 = sadd.s32 %s200, 1
      %p204 = scmp.eq.s32.totalorder %s25, 1
      %p205 = scmp.ne.s32.totalorder %s200, %s202
      %p206 = scmp.eq.s32.totalorder %s25, 0
      %p207 = por %p205, %p206
      %p208 = scmp.ne.s32.totalorder %s200, %s202
      %p209 = scmp.eq.s32.totalorder %s30, 1
      %p210 = por %p208, %p209
      %p211 = scmp.ne.s32.totalorder %s202, %s203
      %p212 = scmp.eq.s32.totalorder %s30, 0
      %p213 = por %p211, %p212
      %p214 = scmp.ne.s32.totalorder %s202, %s203
      %p215 = scmp.eq.s32.totalorder %s31, 1
      %p216 = por %p214, %p215
      %p218 = scmp.ne.s32.totalorder %s203, %s217
      %p219 = scmp.eq.s32.totalorder %s31, 0
      %p220 = por %p218, %p219
      %s222 = sadd.s32 %s221, 1
      %p225 = scmp.eq.s32.totalorder %s25, 1
      %p226 = scmp.ne.s32.totalorder %s221, %s223
      %p227 = scmp.eq.s32.totalorder %s25, 0
      %p228 = por %p226, %p227
      %p229 = scmp.ne.s32.totalorder %s221, %s223
      %p230 = scmp.eq.s32.totalorder %s30, 1
      %p231 = por %p229, %p230
      %p232 = scmp.ne.s32.totalorder %s223, %s224
      %p233 = scmp.eq.s32.totalorder %s30, 0
      %p234 = por %p232, %p233
      %p235 = scmp.ne.s32.totalorder %s223, %s224
      %p236 = scmp.eq.s32.totalorder %s31, 1
      %p237 = por %p235, %p236
      %p239 = scmp.ne.s32.totalorder %s224, %s238
      %p240 = scmp.eq.s32.totalorder %s31, 0
      %p241 = por %p239, %p240
      %s243 = sadd.s32 %s242, 1
      %p246 = scmp.eq.s32.totalorder %s25, 1
      %p247 = scmp.ne.s32.totalorder %s242, %s244
      %p248 = scmp.eq.s32.totalorder %s25, 0
      %p249 = por %p247, %p248
      %p250 = scmp.ne.s32.totalorder %s242, %s244
      %p251 = scmp.eq.s32.totalorder %s30, 1
      %p252 = por %p250, %p251
      %p253 = scmp.ne.s32.totalorder %s244, %s245
      %p254 = scmp.eq.s32.totalorder %s30, 0
      %p255 = por %p253, %p254
      %p256 = scmp.ne.s32.totalorder %s244, %s245
      %p257 = scmp.eq.s32.totalorder %s31, 1
      %p258 = por %p256, %p257
      %p260 = scmp.ne.s32.totalorder %s245, %s259
      %p261 = scmp.eq.s32.totalorder %s31, 0
      %p262 = por %p260, %p261
      %s264 = sadd.s32 %s263, 1
      %p267 = scmp.eq.s32.totalorder %s25, 1
      %p268 = scmp.ne.s32.totalorder %s263, %s265
      %p269 = scmp.eq.s32.totalorder %s25, 0
      %p270 = por %p268, %p269
      %p271 = scmp.ne.s32.totalorder %s263, %s265
      %p272 = scmp.eq.s32.totalorder %s30, 1
      %p273 = por %p271, %p272
      %p274 = scmp.ne.s32.totalorder %s265, %s266
      %p275 = scmp.eq.s32.totalorder %s30, 0
      %p276 = por %p274, %p275
      %p277 = scmp.ne.s32.totalorder %s265, %s266
      %p278 = scmp.eq.s32.totalorder %s31, 1
      %p279 = por %p277, %p278
      %p281 = scmp.ne.s32.totalorder %s266, %s280
      %p282 = scmp.eq.s32.totalorder %s31, 0
      %p283 = por %p281, %p282
      %s285 = sadd.s32 %s284, 1
      %p288 = scmp.eq.s32.totalorder %s25, 1
      %p289 = scmp.ne.s32.totalorder %s284, %s286
      %p290 = scmp.eq.s32.totalorder %s25, 0
      %p291 = por %p289, %p290
      %p292 = scmp.ne.s32.totalorder %s284, %s286
      %p293 = scmp.eq.s32.totalorder %s30, 1
      %p294 = por %p292, %p293
      %p295 = scmp.ne.s32.totalorder %s286, %s287
      %p296 = scmp.eq.s32.totalorder %s30, 0
      %p297 = por %p295, %p296
      %p298 = scmp.ne.s32.totalorder %s286, %s287
      %p299 = scmp.eq.s32.totalorder %s31, 1
      %p300 = por %p298, %p299
      %p302 = scmp.ne.s32.totalorder %s287, %s301
      %p303 = scmp.eq.s32.totalorder %s31, 0
      %p304 = por %p302, %p303
      %s306 = sadd.s32 %s305, 1
      %p309 = scmp.eq.s32.totalorder %s25, 1
      %p310 = scmp.ne.s32.totalorder %s305, %s307
      %p311 = scmp.eq.s32.totalorder %s25, 0
      %p312 = por %p310, %p311
      %p313 = scmp.ne.s32.totalorder %s305, %s307
      %p314 = scmp.eq.s32.totalorder %s30, 1
      %p315 = por %p313, %p314
      %p316 = scmp.ne.s32.totalorder %s307, %s308
      %p317 = scmp.eq.s32.totalorder %s30, 0
      %p318 = por %p316, %p317
      %p319 = scmp.ne.s32.totalorder %s307, %s308
      %p320 = scmp.eq.s32.totalorder %s31, 1
      %p321 = por %p319, %p320
      %p323 = scmp.ne.s32.totalorder %s308, %s322
      %p324 = scmp.eq.s32.totalorder %s31, 0
      %p325 = por %p323, %p324
      %s327 = sadd.s32 %s326, 1
      %p330 = scmp.eq.s32.totalorder %s25, 1
      %p331 = scmp.ne.s32.totalorder %s326, %s328
      %p332 = scmp.eq.s32.totalorder %s25, 0
      %p333 = por %p331, %p332
      %p334 = scmp.ne.s32.totalorder %s326, %s328
      %p335 = scmp.eq.s32.totalorder %s30, 1
      %p336 = por %p334, %p335
      %p337 = scmp.ne.s32.totalorder %s328, %s329
      %p338 = scmp.eq.s32.totalorder %s30, 0
      %p339 = por %p337, %p338
      %p340 = scmp.ne.s32.totalorder %s328, %s329
      %p341 = scmp.eq.s32.totalorder %s31, 1
      %p342 = por %p340, %p341
      %p344 = scmp.ne.s32.totalorder %s329, %s343
      %p345 = scmp.eq.s32.totalorder %s31, 0
      %p346 = por %p344, %p345
      %s348 = sadd.s32 %s347, 1
      %p351 = scmp.eq.s32.totalorder %s25, 1
      %p352 = scmp.ne.s32.totalorder %s347, %s349
      %p353 = scmp.eq.s32.totalorder %s25, 0
      %p354 = por %p352, %p353
      %p355 = scmp.ne.s32.totalorder %s347, %s349
      %p356 = scmp.eq.s32.totalorder %s30, 1
      %p357 = por %p355, %p356
      %p358 = scmp.ne.s32.totalorder %s349, %s350
      %p359 = scmp.eq.s32.totalorder %s30, 0
      %p360 = por %p358, %p359
      %p361 = scmp.ne.s32.totalorder %s349, %s350
      %p362 = scmp.eq.s32.totalorder %s31, 1
      %p363 = por %p361, %p362
      %p365 = scmp.ne.s32.totalorder %s350, %s364
      %p366 = scmp.eq.s32.totalorder %s31, 0
      %p367 = por %p365, %p366
      %s369 = sadd.s32 %s368, 1
      %p372 = scmp.eq.s32.totalorder %s25, 1
      %p373 = scmp.ne.s32.totalorder %s368, %s370
      %p374 = scmp.eq.s32.totalorder %s25, 0
      %p375 = por %p373, %p374
      %p376 = scmp.ne.s32.totalorder %s368, %s370
      %p377 = scmp.eq.s32.totalorder %s30, 1
      %p378 = por %p376, %p377
      %p379 = scmp.ne.s32.totalorder %s370, %s371
      %p380 = scmp.eq.s32.totalorder %s30, 0
      %p381 = por %p379, %p380
      %p382 = scmp.ne.s32.totalorder %s370, %s371
      %p383 = scmp.eq.s32.totalorder %s31, 1
      %p384 = por %p382, %p383
      %p386 = scmp.ne.s32.totalorder %s371, %s385
      %p387 = scmp.eq.s32.totalorder %s31, 0
      %p388 = por %p386, %p387
      %s389 = ssub.s32 %s25, %s32
      %p390 = scmp.eq.s32.totalorder %s389, 0
      %s392 = sadd.s32 %s391, 1
      %s393 = scalar_select %p390, %s391, %s392
      %p396 = pneg %p390
      %p397 = scmp.eq.s32.totalorder %s25, 1
      %p398 = por %p396, %p397
      %p399 = scmp.ne.s32.totalorder %s391, %s394
      %p400 = scmp.eq.s32.totalorder %s25, 0
      %p401 = por %p399, %p400
      %p402 = scmp.ne.s32.totalorder %s391, %s394
      %p403 = scmp.eq.s32.totalorder %s30, 1
      %p404 = por %p402, %p403
      %p405 = scmp.ne.s32.totalorder %s394, %s395
      %p406 = scmp.eq.s32.totalorder %s30, 0
      %p407 = por %p405, %p406
      %p408 = scmp.ne.s32.totalorder %s394, %s395
      %p409 = scmp.eq.s32.totalorder %s31, 1
      %p410 = por %p408, %p409
      %p412 = scmp.ne.s32.totalorder %s395, %s411
      %p413 = scmp.eq.s32.totalorder %s31, 0
      %p414 = por %p412, %p413
      %p415 = scmp.le.s32.totalorder 1, %s25
      %p416 = scmp.lt.s32.totalorder %s25, 3
      %p417 = pnand %p415, %p416
      %p418 = pneg %p417
      // Predicated region
      $region9: #{tpu_custom_call.1} parent=5 // pred_check
        _
      $region10: #{tpu_custom_call.1} parent=5 // pred_check_branch
        %420 = sbr.rel (%p417) target = $region12
      $region11: #{tpu_custom_call.1} parent=5 // pred_region
        %s421 = ssub.s32 %s25, 1
        // Predicated region
        $region13: #{tpu_custom_call.1} parent=11 // pred_check
          %p422 = pneg %p150
        $region14: #{tpu_custom_call.1} parent=11 // pred_check_branch
          %424 = sbr.rel (%p422) target = $region16
        $region15: #{tpu_custom_call.1} parent=11 // pred_region
          _
        $region16: #{tpu_custom_call.1} parent=11 // pred_fallthru
          _
        // Predicated region
        $region17: #{tpu_custom_call.1} parent=11 // pred_check
          %p425 = pneg %p171
        $region18: #{tpu_custom_call.1} parent=11 // pred_check_branch
          %427 = sbr.rel (%p425) target = $region20
        $region19: #{tpu_custom_call.1} parent=11 // pred_region
          _
        $region20: #{tpu_custom_call.1} parent=11 // pred_fallthru
          _
        // Predicated region
        $region21: #{tpu_custom_call.1} parent=11 // pred_check
          %p428 = pneg %p192
        $region22: #{tpu_custom_call.1} parent=11 // pred_check_branch
          %430 = sbr.rel (%p428) target = $region24
        $region23: #{tpu_custom_call.1} parent=11 // pred_region
          _
        $region24: #{tpu_custom_call.1} parent=11 // pred_fallthru
          _
        // Predicated region
        $region25: #{tpu_custom_call.1} parent=11 // pred_check
          %p431 = pneg %p213
        $region26: #{tpu_custom_call.1} parent=11 // pred_check_branch
          %433 = sbr.rel (%p431) target = $region28
        $region27: #{tpu_custom_call.1} parent=11 // pred_region
          _
        $region28: #{tpu_custom_call.1} parent=11 // pred_fallthru
          _
        // Predicated region
        $region29: #{tpu_custom_call.1} parent=11 // pred_check
          %p434 = pneg %p234
        $region30: #{tpu_custom_call.1} parent=11 // pred_check_branch
          %436 = sbr.rel (%p434) target = $region32
        $region31: #{tpu_custom_call.1} parent=11 // pred_region
          _
        $region32: #{tpu_custom_call.1} parent=11 // pred_fallthru
          _
        // Predicated region
        $region33: #{tpu_custom_call.1} parent=11 // pred_check
          %p437 = pneg %p255
        $region34: #{tpu_custom_call.1} parent=11 // pred_check_branch
          %439 = sbr.rel (%p437) target = $region36
        $region35: #{tpu_custom_call.1} parent=11 // pred_region
          _
        $region36: #{tpu_custom_call.1} parent=11 // pred_fallthru
          _
        // Predicated region
        $region37: #{tpu_custom_call.1} parent=11 // pred_check
          %p440 = pneg %p276
        $region38: #{tpu_custom_call.1} parent=11 // pred_check_branch
          %442 = sbr.rel (%p440) target = $region40
        $region39: #{tpu_custom_call.1} parent=11 // pred_region
          _
        $region40: #{tpu_custom_call.1} parent=11 // pred_fallthru
          _
        // Predicated region
        $region41: #{tpu_custom_call.1} parent=11 // pred_check
          %p443 = pneg %p297
        $region42: #{tpu_custom_call.1} parent=11 // pred_check_branch
          %445 = sbr.rel (%p443) target = $region44
        $region43: #{tpu_custom_call.1} parent=11 // pred_region
          _
        $region44: #{tpu_custom_call.1} parent=11 // pred_fallthru
          _
        // Predicated region
        $region45: #{tpu_custom_call.1} parent=11 // pred_check
          %p446 = pneg %p318
        $region46: #{tpu_custom_call.1} parent=11 // pred_check_branch
          %448 = sbr.rel (%p446) target = $region48
        $region47: #{tpu_custom_call.1} parent=11 // pred_region
          _
        $region48: #{tpu_custom_call.1} parent=11 // pred_fallthru
          _
        // Predicated region
        $region49: #{tpu_custom_call.1} parent=11 // pred_check
          %p449 = pneg %p339
        $region50: #{tpu_custom_call.1} parent=11 // pred_check_branch
          %451 = sbr.rel (%p449) target = $region52
        $region51: #{tpu_custom_call.1} parent=11 // pred_region
          _
        $region52: #{tpu_custom_call.1} parent=11 // pred_fallthru
          _
        // Predicated region
        $region53: #{tpu_custom_call.1} parent=11 // pred_check
          %p452 = pneg %p360
        $region54: #{tpu_custom_call.1} parent=11 // pred_check_branch
          %454 = sbr.rel (%p452) target = $region56
        $region55: #{tpu_custom_call.1} parent=11 // pred_region
          _
        $region56: #{tpu_custom_call.1} parent=11 // pred_fallthru
          _
        // Predicated region
        $region57: #{tpu_custom_call.1} parent=11 // pred_check
          %p455 = pneg %p381
        $region58: #{tpu_custom_call.1} parent=11 // pred_check_branch
          %457 = sbr.rel (%p455) target = $region60
        $region59: #{tpu_custom_call.1} parent=11 // pred_region
          _
        $region60: #{tpu_custom_call.1} parent=11 // pred_fallthru
          _
      $region12: #{tpu_custom_call.1} parent=5 // pred_fallthru
        _
      %p458 = scmp.lt.s32.totalorder %s25, 2
      // Predicated region
      $region61: #{tpu_custom_call.1} parent=5 // pred_check
        %p459 = pneg %p458
      $region62: #{tpu_custom_call.1} parent=5 // pred_check_branch
        %461 = sbr.rel (%p459) target = $region64
      $region63: #{tpu_custom_call.1} parent=5 // pred_region
        // Predicated region
        $region65: #{tpu_custom_call.1} parent=63 // pred_check
          %p462 = pneg %p45
        $region66: #{tpu_custom_call.1} parent=63 // pred_check_branch
          %464 = sbr.rel (%p462) target = $region68
        $region67: #{tpu_custom_call.1} parent=63 // pred_region
          %p465 = scmp.lt.s32.totalorder %s25, 1
          %s466 = scalar_select %p465, %s25, 1
          %s467 = smul.addr %s466, 2
          %s468 = smul.addr %s467, 8
          %s469 = scalar_lea.vmem %s0, %s468
        $region68: #{tpu_custom_call.1} parent=63 // pred_fallthru
          _
        // Predicated region
        $region69: #{tpu_custom_call.1} parent=63 // pred_check
          %p470 = pneg %p71
        $region70: #{tpu_custom_call.1} parent=63 // pred_check_branch
          %472 = sbr.rel (%p470) target = $region72
        $region71: #{tpu_custom_call.1} parent=63 // pred_region
          %p473 = scmp.lt.s32.totalorder %s25, 1
          %s474 = scalar_select %p473, %s25, 1
          %s475 = smul.addr %s474, 2
          %s476 = smul.addr %s475, 4
          %s477 = scalar_lea.vmem %s1, %s476
        $region72: #{tpu_custom_call.1} parent=63 // pred_fallthru
          _
        // Predicated region
        $region73: #{tpu_custom_call.1} parent=63 // pred_check
          %p478 = pneg %p97
        $region74: #{tpu_custom_call.1} parent=63 // pred_check_branch
          %480 = sbr.rel (%p478) target = $region76
        $region75: #{tpu_custom_call.1} parent=63 // pred_region
          %p481 = scmp.lt.s32.totalorder %s25, 1
          %s482 = scalar_select %p481, %s25, 1
          %s483 = smul.addr %s482, 2
          %s484 = smul.addr %s483, 8
          %s485 = scalar_lea.vmem %s2, %s484
        $region76: #{tpu_custom_call.1} parent=63 // pred_fallthru
          _
        // Predicated region
        $region77: #{tpu_custom_call.1} parent=63 // pred_check
          %p486 = pneg %p123
        $region78: #{tpu_custom_call.1} parent=63 // pred_check_branch
          %488 = sbr.rel (%p486) target = $region80
        $region79: #{tpu_custom_call.1} parent=63 // pred_region
          %p489 = scmp.lt.s32.totalorder %s25, 1
          %s490 = scalar_select %p489, %s25, 1
          %s491 = smul.addr %s490, 2
          %s492 = smul.addr %s491, 8
          %s493 = scalar_lea.vmem %s3, %s492
        $region80: #{tpu_custom_call.1} parent=63 // pred_fallthru
          _
      $region64: #{tpu_custom_call.1} parent=5 // pred_fallthru
        _
      %p494 = scmp.le.s32.totalorder 1, %s25
      %p495 = scmp.lt.s32.totalorder %s25, 3
      %p496 = pnand %p494, %p495
      %p497 = pneg %p496
      // Predicated region
      $region81: #{tpu_custom_call.1} parent=5 // pred_check
        _
      $region82: #{tpu_custom_call.1} parent=5 // pred_check_branch
        %499 = sbr.rel (%p496) target = $region84
      $region83: #{tpu_custom_call.1} parent=5 // pred_region
        %s500 = ssub.s32 %s25, 1
        %p501 = scmp.lt.s32.totalorder %s30, 1
        %s502 = scalar_select %p501, %s30, 1
        %s503 = smul.addr %s502, 2
        %s504 = smul.addr %s503, 8
        %s505 = scalar_lea.vmem %s0, %s504
        %p506 = pneg %p51
        %p507 = pneg %p48
        %p508 = scmp.lt.s32.totalorder %s30, 1
        %s509 = scalar_select %p508, %s30, 1
        %s510 = smul.addr %s509, 2
        %s511 = smul.addr %s510, 4
        %s512 = scalar_lea.vmem %s1, %s511
        %p513 = pneg %p77
        %p514 = pneg %p74
        %p515 = scmp.lt.s32.totalorder %s30, 1
        %s516 = scalar_select %p515, %s30, 1
        %s517 = smul.addr %s516, 2
        %s518 = smul.addr %s517, 8
        %s519 = scalar_lea.vmem %s2, %s518
        %p520 = pneg %p103
        %p521 = pneg %p100
        %p522 = scmp.lt.s32.totalorder %s30, 1
        %s523 = scalar_select %p522, %s30, 1
        %s524 = smul.addr %s523, 2
        %s525 = smul.addr %s524, 8
        %s526 = scalar_lea.vmem %s3, %s525
        %p527 = pneg %p129
        %p528 = pneg %p126
        %p529 = pneg %p150
        %p530 = pneg %p147
        %p531 = pneg %p171
        %p532 = pneg %p168
        %p533 = pneg %p192
        %p534 = pneg %p189
        %p535 = pneg %p213
        %p536 = pneg %p210
        %p537 = pneg %p234
        %p538 = pneg %p231
        %p539 = pneg %p255
        %p540 = pneg %p252
        %p541 = pneg %p276
        %p542 = pneg %p273
        %p543 = pneg %p297
        %p544 = pneg %p294
        %p545 = pneg %p318
        %p546 = pneg %p315
        %p547 = pneg %p339
        %p548 = pneg %p336
        %p549 = pneg %p360
        %p550 = pneg %p357
        %p551 = pneg %p381
        %p552 = pneg %p378
        %p553 = pneg %p407
        %p554 = pneg %p404
        %s555 = sand.u32 %s394, 1
        %s556 = scalar_lea.sflag [#allocation3], %s555
        %s557 = sand.u32 %s394, 1
        %s558 = scalar_lea.vmem [#allocation2], %s557
        %p559 = scmp.lt.s32.totalorder %s30, 1
        %s560 = scalar_select %p559, %s30, 1
        %s561 = smul.addr %s560, 2
        %s562 = smul.addr %s561, 8
        %s563 = scalar_lea.vmem %s0, %s562
        %p564 = scmp.lt.s32.totalorder %s30, 1
        %s565 = scalar_select %p564, %s30, 1
        %s566 = smul.addr %s565, 2
        %s567 = smul.addr %s566, 4
        %s568 = scalar_lea.vmem %s1, %s567
        %p569 = scmp.lt.s32.totalorder %s30, 1
        %s570 = scalar_select %p569, %s30, 1
        %s571 = smul.addr %s570, 2
        %s572 = smul.addr %s571, 8
        %s573 = scalar_lea.vmem %s2, %s572
        %p574 = scmp.lt.s32.totalorder %s30, 1
        %s575 = scalar_select %p574, %s30, 1
        %s576 = smul.addr %s575, 2
        %s577 = smul.addr %s576, 8
        %s578 = scalar_lea.vmem %s3, %s577
        %v580 = vld [vmem:[%s563] sm:$0xff]
        %v581 = vld [vmem:[%s563 + $0x8] sm:$0xff]
        %v582 = vld [vmem:[%s568] sm:$0xf]
        %v583 = vld [vmem:[%s568 + $0x4] sm:$0xf]
        %v584 = vld [vmem:[%s573] sm:$0xff]
        %v585 = vld [vmem:[%s573 + $0x8] sm:$0xff]
        %v586 = vpack.c.bf16 %v585, %v584
        %v587 = vld [vmem:[%s578] sm:$0xff]
        %v588 = vld [vmem:[%s578 + $0x8] sm:$0xff]
        %v589 = vlaneseq
        %v590 = vand.u32 %v589, 127
        %v591 = vcvt.s32.f32 %v590
        %593 = vset.pattern.permute.xlu0 0
        %594 = vperm.xlu0 %593, %v587
        %v595 = vpop.permute.xlu0 %594
        %598 = vset.pattern.permute.xlu0 0
        %599 = vperm.xlu0 %598, %v588
        %v600 = vpop.permute.xlu0 %599
        %vm602 = vcmp.eq.f32.partialorder %v595, %v591
        %vm603 = vcmp.eq.f32.partialorder %v600, %v591
        %v604 = vsel %vm602, 1, 0
        %v605 = vsel %vm603, 1, 0
        %v606 = vcvt.s32.f32 %v604
        %v607 = vcvt.s32.f32 %v605
        %v608 = vld [vmem:[%s4] sm:$0xf]
        %v609 = vld [vmem:[%s5] sm:$0x3]
        %v610 = vld [vmem:[%s6] sm:$0x1]
        %v611 = vld [vmem:[%s7] sm:$0xff]
        %v612 = vld [vmem:[%s7 + $0x8] sm:$0xff]
        %v613 = vld [vmem:[%s8] sm:$0xff]
        %v614 = vld [vmem:[%s8 + $0x8] sm:$0xff]
        %v615 = vpack.c.bf16 %v581, %v580
        %v618 = vunpack.c.l.b16 %v582
        %v619 = vunpack.c.l.b16 %v583
        %v620 = vpack.c.b16 %v619, %v618
        %vm621 = vcmask 130048
        %v623 = vsel %vm621, %v620, 0
        %625 = vmatprep.subr.bf16.mxu0 0
        %626 = vmatpush1.bf16.msra.mxu0 0
        %627 = vmatprep.subr.bf16.mxu0 0
        %628 = vmatpush1.bf16.msra.mxu0 0
        %629 = vmatprep.subr.bf16.mxu0 0
        %630 = vmatpush1.bf16.msra.mxu0 0
        %631 = vmatprep.subr.bf16.mxu0 0
        %632 = vmatpush1.bf16.msra.mxu0 0
        %633 = vmatprep.subr.bf16.mxu0 0
        %634 = vmatpush1.bf16.msra.mxu0 0
        %635 = vmatprep.subr.bf16.mxu0 0
        %636 = vmatpush1.bf16.msra.mxu0 0
        %637 = vmatprep.subr.bf16.mxu0 0
        %638 = vmatpush1.bf16.msra.mxu0 0
        %639 = vmatprep.subr.bf16.mxu0 0
        %640 = vmatpush1.bf16.msra.mxu0 %v615
        %641 = vmatprep.subr.bf16.mxu0 0
        %642 = vmatpush2.bf16.msra.mxu0 0
        %643 = vmatprep.subr.bf16.mxu0 0
        %644 = vmatpush2.bf16.msra.mxu0 0
        %645 = vmatprep.subr.bf16.mxu0 0
        %646 = vmatpush2.bf16.msra.mxu0 0
        %647 = vmatprep.subr.bf16.mxu0 0
        %648 = vmatpush2.bf16.msra.mxu0 0
        %649 = vmatprep.subr.bf16.mxu0 0
        %650 = vmatpush2.bf16.msra.mxu0 0
        %651 = vmatprep.subr.bf16.mxu0 0
        %652 = vmatpush2.bf16.msra.mxu0 0
        %653 = vmatprep.subr.bf16.mxu0 0
        %654 = vmatpush2.bf16.msra.mxu0 0
        %655 = vmatprep.subr.bf16.mxu0 0
        %656 = vmatpush2.bf16.msra.mxu0 0
        %657 = vmatprep.mubr.bf16.mxu0 0
        %658 = vmatmul.mubr.bf16.gmra.mxu0 %v623
        %v659 = vpop.f32.mrf.mxu0
        %v660 = vadd.f32 0.0, %v659
        %v661 = vpop.f32.mrf.mxu0
        %v662 = vpop.f32.mrf.mxu0
        %v663 = vadd.f32 0.0, %v662
        %v664 = vpop.f32.mrf.mxu0
        %665 = vdwg.mxu0
        %v666 = vpack.c.bf16 %v663, %v660
        %vm667 = vcmask 31744
        %v669 = vsel %vm667, %v586, 0
        %vm671 = vcmask 1041408
        %v673 = vsel %vm671, %v609, 0
        %675 = vmatprep.subr.bf16.mxu0 0
        %676 = vmatpush1.bf16.msra.mxu0 0
        %677 = vmatprep.subr.bf16.mxu0 0
        %678 = vmatpush1.bf16.msra.mxu0 0
        %679 = vmatprep.subr.bf16.mxu0 0
        %680 = vmatpush1.bf16.msra.mxu0 0
        %681 = vmatprep.subr.bf16.mxu0 0
        %682 = vmatpush1.bf16.msra.mxu0 0
        %683 = vmatprep.subr.bf16.mxu0 0
        %684 = vmatpush1.bf16.msra.mxu0 0
        %685 = vmatprep.subr.bf16.mxu0 0
        %686 = vmatpush1.bf16.msra.mxu0 0
        %687 = vmatprep.subr.bf16.mxu0 0
        %688 = vmatpush1.bf16.msra.mxu0 0
        %689 = vmatprep.subr.bf16.mxu0 0
        %690 = vmatpush1.bf16.msra.mxu0 %v673
        %691 = vmatprep.subr.bf16.mxu0 0
        %692 = vmatpush2.bf16.msra.mxu0 0
        %693 = vmatprep.subr.bf16.mxu0 0
        %694 = vmatpush2.bf16.msra.mxu0 0
        %695 = vmatprep.subr.bf16.mxu0 0
        %696 = vmatpush2.bf16.msra.mxu0 0
        %697 = vmatprep.subr.bf16.mxu0 0
        %698 = vmatpush2.bf16.msra.mxu0 0
        %699 = vmatprep.subr.bf16.mxu0 0
        %700 = vmatpush2.bf16.msra.mxu0 0
        %701 = vmatprep.subr.bf16.mxu0 0
        %702 = vmatpush2.bf16.msra.mxu0 0
        %703 = vmatprep.subr.bf16.mxu0 0
        %704 = vmatpush2.bf16.msra.mxu0 0
        %705 = vmatprep.subr.bf16.mxu0 0
        %706 = vmatpush2.bf16.msra.mxu0 0
        %707 = vmatprep.mubr.bf16.mxu0 0
        %708 = vmatmul.mubr.bf16.gmra.mxu0 %v669
        %v709 = vpop.f32.mrf.mxu0
        %v710 = vadd.f32 0.0, %v709
        %v711 = vpop.f32.mrf.mxu0
        %v712 = vpop.f32.mrf.mxu0
        %v713 = vadd.f32 0.0, %v712
        %v714 = vpop.f32.mrf.mxu0
        %715 = vdwg.mxu0
        %vm716 = vcmask 64512
        %v718 = vsel %vm716, %v666, 0
        %vm720 = vcmask 1043456
        %v722 = vsel %vm720, %v608, 0
        %724 = vmatprep.subr.bf16.mxu0 0
        %725 = vmatpush1.bf16.msra.mxu0 0
        %726 = vmatprep.subr.bf16.mxu0 0
        %727 = vmatpush1.bf16.msra.mxu0 0
        %728 = vmatprep.subr.bf16.mxu0 0
        %729 = vmatpush1.bf16.msra.mxu0 0
        %730 = vmatprep.subr.bf16.mxu0 0
        %731 = vmatpush1.bf16.msra.mxu0 0
        %732 = vmatprep.subr.bf16.mxu0 0
        %733 = vmatpush1.bf16.msra.mxu0 0
        %734 = vmatprep.subr.bf16.mxu0 0
        %735 = vmatpush1.bf16.msra.mxu0 0
        %736 = vmatprep.subr.bf16.mxu0 0
        %737 = vmatpush1.bf16.msra.mxu0 0
        %738 = vmatprep.subr.bf16.mxu0 0
        %739 = vmatpush1.bf16.msra.mxu0 %v722
        %740 = vmatprep.subr.bf16.mxu0 0
        %741 = vmatpush2.bf16.msra.mxu0 0
        %742 = vmatprep.subr.bf16.mxu0 0
        %743 = vmatpush2.bf16.msra.mxu0 0
        %744 = vmatprep.subr.bf16.mxu0 0
        %745 = vmatpush2.bf16.msra.mxu0 0
        %746 = vmatprep.subr.bf16.mxu0 0
        %747 = vmatpush2.bf16.msra.mxu0 0
        %748 = vmatprep.subr.bf16.mxu0 0
        %749 = vmatpush2.bf16.msra.mxu0 0
        %750 = vmatprep.subr.bf16.mxu0 0
        %751 = vmatpush2.bf16.msra.mxu0 0
        %752 = vmatprep.subr.bf16.mxu0 0
        %753 = vmatpush2.bf16.msra.mxu0 0
        %754 = vmatprep.subr.bf16.mxu0 0
        %755 = vmatpush2.bf16.msra.mxu0 0
        %756 = vmatprep.mubr.bf16.mxu0 0
        %757 = vmatmul.mubr.bf16.gmra.mxu0 %v718
        %v758 = vpop.f32.mrf.mxu0
        %v759 = vadd.f32 %v710, %v758
        %v760 = vpop.f32.mrf.mxu0
        %v761 = vpop.f32.mrf.mxu0
        %v762 = vadd.f32 %v713, %v761
        %v763 = vpop.f32.mrf.mxu0
        %764 = vdwg.mxu0
        %v766 = vlaneseq
        %v767 = vshrl.u32 %v766, 7
        %v768 = vsub.s32 0, %v767
        %v769 = vrot.slane %v610, %v768
        %v771 = vadd.f32 %v759, %v769
        %v772 = vadd.f32 %v762, %v769
        %774 = vset.pattern.permute.xlu0 0
        %775 = vperm.xlu0 %774, %v606
        %v776 = vpop.permute.xlu0 %775
        %779 = vset.pattern.permute.xlu0 0
        %780 = vperm.xlu0 %779, %v607
        %v781 = vpop.permute.xlu0 %780
        %v783 = vmul.f32 %v776, %v771
        %v784 = vmul.f32 %v781, %v772
        %v785 = vadd.f32 %v783, 0.0
        %v786 = vadd.f32 %v784, 0.0
        %787 = vset.pattern.permute.xlu0 1
        %788 = vperm.xlu0 %787, %v606
        %v789 = vpop.permute.xlu0 %788
        %791 = vset.pattern.permute.xlu0 1
        %792 = vperm.xlu0 %791, %v607
        %v793 = vpop.permute.xlu0 %792
        %v795 = vmul.f32 %v789, %v771
        %v796 = vmul.f32 %v793, %v772
        %799 = vrot.lane.b32.xlu0 %v795, 96
        %v800 = vpop.permute.xlu0 %799
        %801 = vrot.lane.b32.xlu0 %v796, 96
        %v802 = vpop.permute.xlu0 %801
        %v805 = vadd.f32 %v785, %v800
        %v806 = vadd.f32 %v786, %v802
        %807 = vset.pattern.permute.xlu0 2
        %808 = vperm.xlu0 %807, %v606
        %v809 = vpop.permute.xlu0 %808
        %811 = vset.pattern.permute.xlu0 2
        %812 = vperm.xlu0 %811, %v607
        %v813 = vpop.permute.xlu0 %812
        %v815 = vmul.f32 %v809, %v771
        %v816 = vmul.f32 %v813, %v772
        %819 = vrot.lane.b32.xlu0 %v815, 64
        %v820 = vpop.permute.xlu0 %819
        %821 = vrot.lane.b32.xlu0 %v816, 64
        %v822 = vpop.permute.xlu0 %821
        %v825 = vadd.f32 %v805, %v820
        %v826 = vadd.f32 %v806, %v822
        %827 = vset.pattern.permute.xlu0 3
        %828 = vperm.xlu0 %827, %v606
        %v829 = vpop.permute.xlu0 %828
        %831 = vset.pattern.permute.xlu0 3
        %832 = vperm.xlu0 %831, %v607
        %v833 = vpop.permute.xlu0 %832
        %v835 = vmul.f32 %v829, %v771
        %v836 = vmul.f32 %v833, %v772
        %839 = vrot.lane.b32.xlu0 %v835, 32
        %v840 = vpop.permute.xlu0 %839
        %841 = vrot.lane.b32.xlu0 %v836, 32
        %v842 = vpop.permute.xlu0 %841
        %v845 = vadd.f32 %v825, %v840
        %v846 = vadd.f32 %v826, %v842
        %848 = vset.pattern.permute.xlu0 0
        %849 = vperm.xlu0 %848, %v611
        %v850 = vpop.permute.xlu0 %849
        %853 = vset.pattern.permute.xlu0 0
        %854 = vperm.xlu0 %853, %v612
        %v855 = vpop.permute.xlu0 %854
        %v857 = vmul.f32 %v845, %v850
        %v858 = vmul.f32 %v846, %v855
        %860 = vset.pattern.permute.xlu0 0
        %861 = vperm.xlu0 %860, %v613
        %v862 = vpop.permute.xlu0 %861
        %865 = vset.pattern.permute.xlu0 0
        %866 = vperm.xlu0 %865, %v614
        %v867 = vpop.permute.xlu0 %866
        %v869 = vadd.f32 %v857, %v862
        %v870 = vadd.f32 %v858, %v867
        %v871 = vmax.f32 %v869, 0.0
        %v872 = vmax.f32 %v870, 0.0
        %v873 = vld [vmem:[%s9] sm:$0xf]
        %v874 = vld [vmem:[%s9 + $0x4] sm:$0xf]
        %v875 = vld [vmem:[%s9 + $0x8] sm:$0xf]
        %v876 = vld [vmem:[%s9 + $0xc] sm:$0xf]
        %v877 = vld [vmem:[%s10] sm:$0x3]
        %v878 = vld [vmem:[%s11] sm:$0x1]
        %v879 = vld [vmem:[%s12] sm:$0xff]
        %v880 = vld [vmem:[%s12 + $0x8] sm:$0xff]
        %v881 = vld [vmem:[%s13] sm:$0xff]
        %v882 = vld [vmem:[%s13 + $0x8] sm:$0xff]
        %v883 = vpack.c.bf16 %v872, %v871
        %884 = vmatprep.subr.bf16.mxu0 0
        %885 = vmatpush1.bf16.msra.mxu0 0
        %886 = vmatprep.subr.bf16.mxu0 0
        %887 = vmatpush1.bf16.msra.mxu0 0
        %888 = vmatprep.subr.bf16.mxu0 0
        %889 = vmatpush1.bf16.msra.mxu0 0
        %890 = vmatprep.subr.bf16.mxu0 0
        %891 = vmatpush1.bf16.msra.mxu0 0
        %892 = vmatprep.subr.bf16.mxu0 0
        %893 = vmatpush1.bf16.msra.mxu0 0
        %894 = vmatprep.subr.bf16.mxu0 0
        %895 = vmatpush1.bf16.msra.mxu0 0
        %896 = vmatprep.subr.bf16.mxu0 0
        %897 = vmatpush1.bf16.msra.mxu0 0
        %898 = vmatprep.subr.bf16.mxu0 0
        %899 = vmatpush1.bf16.msra.mxu0 %v883
        %900 = vmatprep.subr.bf16.mxu0 0
        %901 = vmatpush2.bf16.msra.mxu0 0
        %902 = vmatprep.subr.bf16.mxu0 0
        %903 = vmatpush2.bf16.msra.mxu0 0
        %904 = vmatprep.subr.bf16.mxu0 0
        %905 = vmatpush2.bf16.msra.mxu0 0
        %906 = vmatprep.subr.bf16.mxu0 0
        %907 = vmatpush2.bf16.msra.mxu0 0
        %908 = vmatprep.subr.bf16.mxu0 0
        %909 = vmatpush2.bf16.msra.mxu0 0
        %910 = vmatprep.subr.bf16.mxu0 0
        %911 = vmatpush2.bf16.msra.mxu0 0
        %912 = vmatprep.subr.bf16.mxu0 0
        %913 = vmatpush2.bf16.msra.mxu0 0
        %914 = vmatprep.subr.bf16.mxu0 0
        %915 = vmatpush2.bf16.msra.mxu0 0
        %916 = vmatprep.mubr.bf16.mxu0 0
        %917 = vmatmul.mubr.bf16.gmra.mxu0 %v623
        %v918 = vpop.f32.mrf.mxu0
        %v919 = vadd.f32 0.0, %v918
        %v920 = vpop.f32.mrf.mxu0
        %v921 = vpop.f32.mrf.mxu0
        %v922 = vadd.f32 0.0, %v921
        %v923 = vpop.f32.mrf.mxu0
        %924 = vdwg.mxu0
        %v925 = vpack.c.bf16 %v922, %v919
        %v927 = vsel %vm671, %v877, 0
        %929 = vmatprep.subr.bf16.mxu0 0
        %930 = vmatpush1.bf16.msra.mxu0 0
        %931 = vmatprep.subr.bf16.mxu0 0
        %932 = vmatpush1.bf16.msra.mxu0 0
        %933 = vmatprep.subr.bf16.mxu0 0
        %934 = vmatpush1.bf16.msra.mxu0 0
        %935 = vmatprep.subr.bf16.mxu0 0
        %936 = vmatpush1.bf16.msra.mxu0 0
        %937 = vmatprep.subr.bf16.mxu0 0
        %938 = vmatpush1.bf16.msra.mxu0 0
        %939 = vmatprep.subr.bf16.mxu0 0
        %940 = vmatpush1.bf16.msra.mxu0 0
        %941 = vmatprep.subr.bf16.mxu0 0
        %942 = vmatpush1.bf16.msra.mxu0 0
        %943 = vmatprep.subr.bf16.mxu0 0
        %944 = vmatpush1.bf16.msra.mxu0 %v927
        %945 = vmatprep.subr.bf16.mxu0 0
        %946 = vmatpush2.bf16.msra.mxu0 0
        %947 = vmatprep.subr.bf16.mxu0 0
        %948 = vmatpush2.bf16.msra.mxu0 0
        %949 = vmatprep.subr.bf16.mxu0 0
        %950 = vmatpush2.bf16.msra.mxu0 0
        %951 = vmatprep.subr.bf16.mxu0 0
        %952 = vmatpush2.bf16.msra.mxu0 0
        %953 = vmatprep.subr.bf16.mxu0 0
        %954 = vmatpush2.bf16.msra.mxu0 0
        %955 = vmatprep.subr.bf16.mxu0 0
        %956 = vmatpush2.bf16.msra.mxu0 0
        %957 = vmatprep.subr.bf16.mxu0 0
        %958 = vmatpush2.bf16.msra.mxu0 0
        %959 = vmatprep.subr.bf16.mxu0 0
        %960 = vmatpush2.bf16.msra.mxu0 0
        %961 = vmatprep.mubr.bf16.mxu0 0
        %962 = vmatmul.mubr.bf16.gmra.mxu0 %v669
        %v963 = vpop.f32.mrf.mxu0
        %v964 = vadd.f32 0.0, %v963
        %v965 = vpop.f32.mrf.mxu0
        %v966 = vpop.f32.mrf.mxu0
        %v967 = vadd.f32 0.0, %v966
        %v968 = vpop.f32.mrf.mxu0
        %969 = vdwg.mxu0
        %v974 = vunpack.c.l.b16 %v873
        %v975 = vunpack.c.l.b16 %v874
        %v976 = vunpack.c.l.b16 %v875
        %v977 = vunpack.c.l.b16 %v876
        %v978 = vpack.c.b16 %v975, %v974
        %v979 = vpack.c.b16 %v977, %v976
        %vm982 = vcmask 261120
        %v984 = vsel %vm982, %v925, 0
        %986 = vmatprep.subr.bf16.mxu0 0
        %987 = vmatpush1.bf16.msra.mxu0 0
        %988 = vmatprep.subr.bf16.mxu0 0
        %989 = vmatpush1.bf16.msra.mxu0 0
        %990 = vmatprep.subr.bf16.mxu0 0
        %991 = vmatpush1.bf16.msra.mxu0 0
        %992 = vmatprep.subr.bf16.mxu0 0
        %993 = vmatpush1.bf16.msra.mxu0 0
        %994 = vmatprep.subr.bf16.mxu0 0
        %995 = vmatpush1.bf16.msra.mxu0 0
        %996 = vmatprep.subr.bf16.mxu0 0
        %997 = vmatpush1.bf16.msra.mxu0 0
        %998 = vmatprep.subr.bf16.mxu0 0
        %999 = vmatpush1.bf16.msra.mxu0 %v979
        %1000 = vmatprep.subr.bf16.mxu0 0
        %1001 = vmatpush1.bf16.msra.mxu0 %v978
        %1002 = vmatprep.subr.bf16.mxu0 0
        %1003 = vmatpush2.bf16.msra.mxu0 0
        %1004 = vmatprep.subr.bf16.mxu0 0
        %1005 = vmatpush2.bf16.msra.mxu0 0
        %1006 = vmatprep.subr.bf16.mxu0 0
        %1007 = vmatpush2.bf16.msra.mxu0 0
        %1008 = vmatprep.subr.bf16.mxu0 0
        %1009 = vmatpush2.bf16.msra.mxu0 0
        %1010 = vmatprep.subr.bf16.mxu0 0
        %1011 = vmatpush2.bf16.msra.mxu0 0
        %1012 = vmatprep.subr.bf16.mxu0 0
        %1013 = vmatpush2.bf16.msra.mxu0 0
        %1014 = vmatprep.subr.bf16.mxu0 0
        %1015 = vmatpush2.bf16.msra.mxu0 0
        %1016 = vmatprep.subr.bf16.mxu0 0
        %1017 = vmatpush2.bf16.msra.mxu0 0
        %1018 = vmatprep.mubr.bf16.mxu0 0
        %1019 = vmatmul.mubr.bf16.gmra.mxu0 %v984
        %v1020 = vpop.f32.mrf.mxu0
        %v1021 = vadd.f32 %v964, %v1020
        %v1022 = vpop.f32.mrf.mxu0
        %v1023 = vpop.f32.mrf.mxu0
        %v1024 = vadd.f32 %v967, %v1023
        %v1025 = vpop.f32.mrf.mxu0
        %1026 = vdwg.mxu0
        %v1028 = vlaneseq
        %v1029 = vshrl.u32 %v1028, 7
        %v1030 = vsub.s32 0, %v1029
        %v1031 = vrot.slane %v878, %v1030
        %v1033 = vadd.f32 %v1021, %v1031
        %v1034 = vadd.f32 %v1024, %v1031
        %v1035 = vmul.f32 %v776, %v1033
        %v1036 = vmul.f32 %v781, %v1034
        %v1037 = vadd.f32 %v1035, 0.0
        %v1038 = vadd.f32 %v1036, 0.0
        %v1039 = vmul.f32 %v789, %v1033
        %v1040 = vmul.f32 %v793, %v1034
        %1043 = vrot.lane.b32.xlu0 %v1039, 96
        %v1044 = vpop.permute.xlu0 %1043
        %1045 = vrot.lane.b32.xlu0 %v1040, 96
        %v1046 = vpop.permute.xlu0 %1045
        %v1049 = vadd.f32 %v1037, %v1044
        %v1050 = vadd.f32 %v1038, %v1046
        %v1051 = vmul.f32 %v809, %v1033
        %v1052 = vmul.f32 %v813, %v1034
        %1055 = vrot.lane.b32.xlu0 %v1051, 64
        %v1056 = vpop.permute.xlu0 %1055
        %1057 = vrot.lane.b32.xlu0 %v1052, 64
        %v1058 = vpop.permute.xlu0 %1057
        %v1061 = vadd.f32 %v1049, %v1056
        %v1062 = vadd.f32 %v1050, %v1058
        %v1063 = vmul.f32 %v829, %v1033
        %v1064 = vmul.f32 %v833, %v1034
        %1067 = vrot.lane.b32.xlu0 %v1063, 32
        %v1068 = vpop.permute.xlu0 %1067
        %1069 = vrot.lane.b32.xlu0 %v1064, 32
        %v1070 = vpop.permute.xlu0 %1069
        %v1073 = vadd.f32 %v1061, %v1068
        %v1074 = vadd.f32 %v1062, %v1070
        %1076 = vset.pattern.permute.xlu0 0
        %1077 = vperm.xlu0 %1076, %v879
        %v1078 = vpop.permute.xlu0 %1077
        %1081 = vset.pattern.permute.xlu0 0
        %1082 = vperm.xlu0 %1081, %v880
        %v1083 = vpop.permute.xlu0 %1082
        %v1085 = vmul.f32 %v1073, %v1078
        %v1086 = vmul.f32 %v1074, %v1083
        %1088 = vset.pattern.permute.xlu0 0
        %1089 = vperm.xlu0 %1088, %v881
        %v1090 = vpop.permute.xlu0 %1089
        %1093 = vset.pattern.permute.xlu0 0
        %1094 = vperm.xlu0 %1093, %v882
        %v1095 = vpop.permute.xlu0 %1094
        %v1097 = vadd.f32 %v1085, %v1090
        %v1098 = vadd.f32 %v1086, %v1095
        %v1099 = vmax.f32 %v1097, 0.0
        %v1100 = vmax.f32 %v1098, 0.0
        %v1101 = vld [vmem:[%s14] sm:$0xf]
        %v1102 = vld [vmem:[%s14 + $0x4] sm:$0xf]
        %v1103 = vld [vmem:[%s14 + $0x8] sm:$0xf]
        %v1104 = vld [vmem:[%s14 + $0xc] sm:$0xf]
        %v1105 = vld [vmem:[%s15] sm:$0x1]
        %v1106 = vsel %vm982, %v1099, 0.0
        %v1107 = vsel %vm982, %v1100, 0.0
        %v1108 = vadd.f32 %v1106, %v1107
        %v1109 = vrot.slane %v1108, 4
        %v1110 = vadd.f32 %v1108, %v1109
        %v1111 = vrot.slane %v1110, 2
        %v1112 = vadd.f32 %v1110, %v1111
        %v1113 = vrot.slane %v1112, 1
        %v1114 = vadd.f32 %v1112, %v1113
        %v1115 = vrcp.pop 16.0
        %v1116 = vmul.f32 %v1114, %v1115
        %v1117 = vpack.c.bf16 %v1116, %v1116
        %v1122 = vunpack.c.l.b16 %v1101
        %v1123 = vunpack.c.l.b16 %v1102
        %v1124 = vunpack.c.l.b16 %v1103
        %v1125 = vunpack.c.l.b16 %v1104
        %v1126 = vpack.c.b16 %v1123, %v1122
        %v1127 = vpack.c.b16 %v1125, %v1124
        %v1131 = vsel %vm982, %v1117, 0
        %1133 = vmatprep.subr.bf16.mxu0 0
        %1134 = vmatpush1.bf16.msra.mxu0 0
        %1135 = vmatprep.subr.bf16.mxu0 0
        %1136 = vmatpush1.bf16.msra.mxu0 0
        %1137 = vmatprep.subr.bf16.mxu0 0
        %1138 = vmatpush1.bf16.msra.mxu0 0
        %1139 = vmatprep.subr.bf16.mxu0 0
        %1140 = vmatpush1.bf16.msra.mxu0 0
        %1141 = vmatprep.subr.bf16.mxu0 0
        %1142 = vmatpush1.bf16.msra.mxu0 0
        %1143 = vmatprep.subr.bf16.mxu0 0
        %1144 = vmatpush1.bf16.msra.mxu0 0
        %1145 = vmatprep.subr.bf16.mxu0 0
        %1146 = vmatpush1.bf16.msra.mxu0 %v1127
        %1147 = vmatprep.subr.bf16.mxu0 0
        %1148 = vmatpush1.bf16.msra.mxu0 %v1126
        %1149 = vmatprep.subr.bf16.mxu0 0
        %1150 = vmatpush2.bf16.msra.mxu0 0
        %1151 = vmatprep.subr.bf16.mxu0 0
        %1152 = vmatpush2.bf16.msra.mxu0 0
        %1153 = vmatprep.subr.bf16.mxu0 0
        %1154 = vmatpush2.bf16.msra.mxu0 0
        %1155 = vmatprep.subr.bf16.mxu0 0
        %1156 = vmatpush2.bf16.msra.mxu0 0
        %1157 = vmatprep.subr.bf16.mxu0 0
        %1158 = vmatpush2.bf16.msra.mxu0 0
        %1159 = vmatprep.subr.bf16.mxu0 0
        %1160 = vmatpush2.bf16.msra.mxu0 0
        %1161 = vmatprep.subr.bf16.mxu0 0
        %1162 = vmatpush2.bf16.msra.mxu0 0
        %1163 = vmatprep.subr.bf16.mxu0 0
        %1164 = vmatpush2.bf16.msra.mxu0 0
        %1165 = vmatprep.mubr.bf16.mxu0 0
        %1166 = vmatmul.mubr.bf16.gmra.mxu0 %v1131
        %v1167 = vpop.f32.mrf.mxu0
        %v1168 = vadd.f32 %v1105, %v1167
        %v1169 = vpop.f32.mrf.mxu0
        %v1170 = vpop.f32.mrf.mxu0
        %v1171 = vpop.f32.mrf.mxu0
        %1172 = vdwg.mxu0
        %v1173 = vmax.f32 %v1168, 0.0
        %v1174 = vmin.f32 %v1173, 1.0
        %vm1175 = vcmask 57344
        %1176 = vst.msk [vmem:[%s558] sm:$0x1] %vm1175, %v1174
        %s1177 = sand.u32 %s394, 1
        %s1178 = scalar_lea.sflag [#allocation3], %s1177
        %s1179 = sand.u32 %s394, 1
        %s1180 = scalar_lea.vmem [#allocation2], %s1179
        // Predicated region
        $region85: #{tpu_custom_call.1} parent=83 // pred_check
          %p1181 = pneg %p404
        $region86: #{tpu_custom_call.1} parent=83 // pred_check_branch
          %1183 = sbr.rel (%p1181) target = $region88
        $region87: #{tpu_custom_call.1} parent=83 // pred_region
          %s1185 = ssub.s32 16, 16
          %1186 = vsyncadd %s1178, %s1185
          %s1187 = smul.addr %s30, 16
          %s1188 = scalar_lea.hbm %s16, %s1187
          %s1190 = sshll.u32 %s1180, 4
          %s1191 = int_to_ptr.vmem [resolvable:$true] %s1190
          %1193 = dma.vmem_to_hbm [thread:$0]  %s1191, 16, %s1188, %s1178
        $region88: #{tpu_custom_call.1} parent=83 // pred_fallthru
          _
      $region84: #{tpu_custom_call.1} parent=5 // pred_fallthru
        _
      %p1194 = scmp.le.s32.totalorder 2, %s25
      // Predicated region
      $region89: #{tpu_custom_call.1} parent=5 // pred_check
        %p1195 = pneg %p1194
      $region90: #{tpu_custom_call.1} parent=5 // pred_check_branch
        %1197 = sbr.rel (%p1195) target = $region92
      $region91: #{tpu_custom_call.1} parent=5 // pred_region
        %s1198 = ssub.s32 %s25, 2
        // Predicated region
        $region93: #{tpu_custom_call.1} parent=91 // pred_check
          %p1199 = pneg %p410
        $region94: #{tpu_custom_call.1} parent=91 // pred_check_branch
          %1201 = sbr.rel (%p1199) target = $region96
        $region95: #{tpu_custom_call.1} parent=91 // pred_region
          %s1202 = sand.u32 %s395, 1
          %s1203 = scalar_lea.sflag [#allocation3], %s1202
          %s1204 = sand.u32 %s395, 1
          %s1205 = scalar_lea.vmem [#allocation2], %s1204
          %1206 = dma.done %s1203, 16
        $region96: #{tpu_custom_call.1} parent=91 // pred_fallthru
          _
      $region92: #{tpu_custom_call.1} parent=5 // pred_fallthru
        _
    $region6: #{tpu_custom_call.1} parent=1 // loop_footer
      %s29 = sadd.s32 1, %s25
    $region7: #{tpu_custom_call.1} parent=1 // loop_footer_branch
      %24 = sbr.rel target = $region3
    $region8: #{tpu_custom_call.1} parent=1 // loop_exit
      _
    %1207 = vsyncpa [#allocation3], 1
    %s1208 = scalar_lea.sflag [#allocation3], 1
    %1209 = vsyncpa %s1208, 1

</llo_original>
